<compile_context>
chip_gen: v5e
topology: v5e:2x2
jax: 0.10.0
libtpu: 0.0.40
codegen_flags: <defaults>
</compile_context>

<pallas_src>
import functools

import jax
import jax.numpy as jnp
from jax.experimental import pallas as pl
from jax.experimental.pallas import tpu as pltpu


# ----------------------------------------------------------------------------
# Fused kernel.  Grid = (B, V); the conv runs only at v == 0 and its result is
# kept in a persistent VMEM scratch for the remaining V-1 view steps.
# ----------------------------------------------------------------------------
def _fullgen_kernel(x_ref, sv_ref, dv_ref, wvt_ref, bv_ref, w_ref,
                    out_ref, pad_ref, conv_ref, *, H, W, Cin, Cout, K, PL):
    # x_ref:    (Cin, H*W)        source image, flattened (lane-dense)
    # sv_ref:   (N, 3)            source vertices
    # dv_ref:   (N, 3)            destination vertices of *this* view
    # wvt_ref:  (Cout, 3)         vertex-linear weight, transposed
    # bv_ref:   (Cout, 1)         vertex-linear bias
    # w_ref:    (Cout*Cin*K*K,)   conv weights, flat, SMEM scalar reads
    # out_ref:  (Cout, H*W)       rec image for this (batch, view), lane-dense
    # pad_ref:  (Cin, 2*PL+H*W)   flat image with >= W+1 zeros of lead/trail (H-pad)
    # conv_ref: (Cout, H*W)       conv result; persists across the V view steps
    HW = H * W
    v = pl.program_id(1)

    # ---- conv: once per batch element, reused by all V views ----------------
    @pl.when(v == 0)
    def _():
        # Halo-only zeroing (interior is fully overwritten below; halo regions
        # are never written anywhere else).  Done per batch element, not per
        # grid step, and megacore-safe (scratch is per-TensorCore).
        zeros_pad = jnp.zeros((Cin, PL), jnp.float32)
        pad_ref[:, 0:PL] = zeros_pad                       # top halo (+ alignment)
        pad_ref[:, PL + HW:2 * PL + HW] = zeros_pad        # bottom halo
        pad_ref[:, PL:PL + HW] = x_ref[...]                # lane-aligned interior

        # Column masks for the W boundary, hoisted above all loops; applied once
        # per (co, kw) partial sum instead of per tap.
        col = jax.lax.broadcasted_iota(jnp.int32, (1, HW), 1) % W
        not_first_col = col != 0            # kw == 0 taps must not wrap from w-1
        not_last_col = col != (W - 1)       # kw == 2 taps must not wrap from w+1

        # Tap-shift conv, one output channel at a time (K live partial-sum
        # chains -> bounded vreg pressure; VALU is the binding slot, extra VMEM
        # tap re-loads ride the spare vld slots).
        for co in range(Cout):
            chains = [None] * K             # one chain per kw
            for ci in range(Cin):
                for kh in range(K):
                    for kw in range(K):
                        s = PL + (kh - 1) * W + (kw - 1)          # static lane shift
                        tap = pad_ref[ci:ci + 1, s:s + HW]        # (1, HW)
                        ws = w_ref[((co * Cin + ci) * K + kh) * K + kw]  # SMEM scalar
                        term = tap * ws
                        chains[kw] = term if chains[kw] is None else chains[kw] + term
            acc = (jnp.where(not_first_col, chains[0], 0.0)
                   + chains[1]
                   + jnp.where(not_last_col, chains[2], 0.0))
            conv_ref[co:co + 1, :] = acc

    # ---- per-view vertex bias + sigmoid + one lane-dense store ---------------
    mean = jnp.mean(dv_ref[...] - sv_ref[...], axis=0, keepdims=True)          # (1, 3)
    bias = jnp.sum(wvt_ref[...] * mean, axis=1, keepdims=True) + bv_ref[...]   # (Cout, 1)
    out_ref[...] = jax.nn.sigmoid(conv_ref[...] + bias)


# ----------------------------------------------------------------------------
# FullGenerator.forward
# ----------------------------------------------------------------------------
def full_generator_forward(src_img, src_verts, dst_verts, params):
    """src_img: (B, 3, H, W) in [0,1]; src_verts: (B, N, 3); dst_verts: (B, V, N, 3).

    Returns rec_dst_img.view(-1, num_view, *src_img.shape[1:]) == (B, V, 3, H, W).
    """
    B, Cin, H, W = src_img.shape
    V, N = dst_verts.shape[1], dst_verts.shape[2]
    conv_w = params["conv_w"]
    Cout, _, K, _ = conv_w.shape
    assert K == 3, "synthetic generator uses a 3x3 conv"

    HW = H * W
    # Lead/trail pad: >= W + 1 zeros so every shifted tap stays in-bounds, rounded
    # up to a 128-lane boundary so the interior copy is a lane-aligned store.
    PL = ((W + K // 2 + 127) // 128) * 128

    wvt = params["wv"].T.astype(jnp.float32)                   # (Cout, 3)
    bv2 = params["bv"].reshape(Cout, 1).astype(jnp.float32)    # (Cout, 1)
    w_flat = conv_w.reshape(-1).astype(jnp.float32)            # (Cout*Cin*K*K,)
    x_flat = src_img.reshape(B, Cin, HW).astype(jnp.float32)   # free metadata reshape

    kernel = functools.partial(_fullgen_kernel,
                               H=H, W=W, Cin=Cin, Cout=Cout, K=K, PL=PL)

    # The multiview expand lives in the index_maps: src_img / src_verts blocks are
    # indexed by the batch element only, so each is DMA'd once per batch element
    # (block index unchanged across the v axis => copy elided), never V times.
    out = pl.pallas_call(
        kernel,
        out_shape=jax.ShapeDtypeStruct((B, V, Cout, HW), jnp.float32),
        grid=(B, V),
        in_specs=[
            pl.BlockSpec((None, Cin, HW), lambda b, v: (b, 0, 0)),        # src_img
            pl.BlockSpec((None, N, 3), lambda b, v: (b, 0, 0)),           # src_verts
            pl.BlockSpec((None, None, N, 3), lambda b, v: (b, v, 0, 0)),  # dst_verts
            pl.BlockSpec((Cout, 3), lambda b, v: (0, 0)),                 # wv^T
            pl.BlockSpec((Cout, 1), lambda b, v: (0, 0)),                 # bv
            pl.BlockSpec(memory_space=pltpu.MemorySpace.SMEM),            # conv weights
        ],
        out_specs=pl.BlockSpec((None, None, Cout, HW), lambda b, v: (b, v, 0, 0)),
        scratch_shapes=[pltpu.VMEM((Cin, 2 * PL + HW), jnp.float32),      # padded image
                        pltpu.VMEM((Cout, HW), jnp.float32)],             # conv result
        compiler_params=pltpu.CompilerParams(
            dimension_semantics=("parallel", "arbitrary"),
            vmem_limit_bytes=32 * 1024 * 1024),
    )(x_flat, src_verts.astype(jnp.float32), dst_verts.astype(jnp.float32),
      wvt, bv2, w_flat)

    return out.reshape(B, V, Cout, H, W)


# ----------------------------------------------------------------------------
# Pure-JAX reference (same math, no Pallas) for verification.
# ----------------------------------------------------------------------------
def reference_forward(src_img, src_verts, dst_verts, params):
    B, C, H, W = src_img.shape
    V = dst_verts.shape[1]

    def fm(x):
        return jnp.reshape(
            jnp.broadcast_to(x[:, None], (x.shape[0], V) + x.shape[1:]),
            (x.shape[0] * V,) + x.shape[1:])

    src_img_f, src_verts_f = fm(src_img), fm(src_verts)
    dst_verts_f = dst_verts.reshape((B * V,) + dst_verts.shape[2:])

    m = jnp.mean(dst_verts_f - src_verts_f, axis=1)                       # (BV, 3)
    bias = m @ params["wv"] + params["bv"]                                # (BV, C)

    x_pad = jnp.pad(src_img_f, ((0, 0), (0, 0), (1, 1), (1, 1)))
    w = params["conv_w"]
    acc = jnp.zeros((B * V, C, H, W), jnp.float32)
    for co in range(C):
        ch = jnp.zeros((B * V, H, W), jnp.float32)
        for ci in range(C):
            for kh in range(3):
                for kw in range(3):
                    ch = ch + x_pad[:, ci, kh:kh + H, kw:kw + W] * w[co, ci, kh, kw]
        acc = acc.at[:, co].set(ch)
    rec = jax.nn.sigmoid(acc + bias[:, :, None, None])
    return rec.reshape(B, V, C, H, W)


if __name__ == "__main__":
    B, V, C, H, W, N = 2, 2, 3, 16, 16, 8

    key = jax.random.PRNGKey(0)
    k1, k2, k3, pk1, pk2, pk3 = jax.random.split(key, 6)
    src_img = jax.random.uniform(k1, (B, C, H, W), jnp.float32)      # normalized to [0, 1]
    src_verts = jax.random.normal(k2, (B, N, 3), jnp.float32)
    dst_verts = jax.random.normal(k3, (B, V, N, 3), jnp.float32)

    params = {
        "conv_w": jax.random.normal(pk1, (C, C, 3, 3), jnp.float32) * 0.1,  # OIHW
        "wv": jax.random.normal(pk2, (3, C), jnp.float32) * 0.5,
        "bv": jax.random.normal(pk3, (C,), jnp.float32) * 0.1,
    }

    fwd = jax.jit(functools.partial(full_generator_forward, params=params))
    out = jax.block_until_ready(fwd(src_img, src_verts, dst_verts))

    assert out.shape == (B, V, C, H, W), out.shape
    ref = reference_forward(src_img, src_verts, dst_verts, params)
    err = float(jnp.max(jnp.abs(out - ref)))
    assert jnp.allclose(out, ref, atol=1e-4, rtol=1e-4), err

    print("KERNEL_OK")
</pallas_src>

<mosaic_0001>
module attributes {stable_mosaic.version = 11 : i64} {
  func.func @_fullgen_kernel(%arg0: i32, %arg1: i32, %arg2: memref<1x3x256xf32, #tpu.memory_space<vmem>>, %arg3: memref<1x8x3xf32, #tpu.memory_space<vmem>>, %arg4: memref<1x1x8x3xf32, #tpu.memory_space<vmem>>, %arg5: memref<3x3xf32, #tpu.memory_space<vmem>>, %arg6: memref<3x1xf32, #tpu.memory_space<vmem>>, %arg7: memref<81xf32, #tpu.memory_space<smem>>, %arg8: memref<1x1x3x256xf32, #tpu.memory_space<vmem>>, %arg9: memref<3x512xf32, #tpu.memory_space<vmem>>, %arg10: memref<3x256xf32, #tpu.memory_space<vmem>>) attributes {dimension_semantics = [#tpu.dimension_semantics<parallel>, #tpu.dimension_semantics<arbitrary>], iteration_bounds = array<i64: 2, 2>, scalar_prefetch = 0 : i64, scratch_operands = 2 : i64, tpu.core_type = #tpu.core_type<tc>, window_params = [{transform_indices = @transform_0, window_bounds = array<i64: 1, 3, 256>}, {transform_indices = @transform_1, window_bounds = array<i64: 1, 8, 3>}, {transform_indices = @transform_2, window_bounds = array<i64: 1, 1, 8, 3>}, {pipeline_mode = #tpu.pipeline_mode<synchronous>, transform_indices = @transform_3, window_bounds = array<i64: 3, 3>}, {pipeline_mode = #tpu.pipeline_mode<synchronous>, transform_indices = @transform_4, window_bounds = array<i64: 3, 1>}, {transform_indices = @transform_5, window_bounds = array<i64: 81>}, {transform_indices = @transform_6, window_bounds = array<i64: 1, 1, 3, 256>}]} {
    %c0_i32 = arith.constant 0 : i32
    %0 = arith.cmpi eq, %arg1, %c0_i32 : i32
    %1 = arith.extui %0 : i1 to i32
    %c0_i32_0 = arith.constant 0 : i32
    %2 = arith.cmpi ne, %1, %c0_i32_0 : i32
    scf.if %2 {
      %cst_20 = arith.constant 0.000000e+00 : f32
      %30 = vector.broadcast %cst_20 : f32 to vector<3x128xf32>
      %c0_21 = arith.constant 0 : index
      %c0_22 = arith.constant 0 : index
      %31 = vector.load %arg9[%c0_21, %c0_22] : memref<3x512xf32, #tpu.memory_space<vmem>>, vector<3x128xf32>
      tpu.vector_store %arg9[%c0_21, %c0_22], %30 {strides = array<i32>} : memref<3x512xf32, #tpu.memory_space<vmem>>, vector<3x128xf32>,
      %c0_23 = arith.constant 0 : index
      %c384 = arith.constant 384 : index
      %32 = vector.load %arg9[%c0_23, %c384] : memref<3x512xf32, #tpu.memory_space<vmem>>, vector<3x128xf32>
      tpu.vector_store %arg9[%c0_23, %c384], %30 {strides = array<i32>} : memref<3x512xf32, #tpu.memory_space<vmem>>, vector<3x128xf32>,
      %c0_24 = arith.constant 0 : index
      %c0_25 = arith.constant 0 : index
      %c0_26 = arith.constant 0 : index
      %33 = vector.load %arg2[%c0_24, %c0_25, %c0_26] : memref<1x3x256xf32, #tpu.memory_space<vmem>>, vector<1x3x256xf32>
      %34 = vector.shape_cast %33 : vector<1x3x256xf32> to vector<3x256xf32>
      %c0_27 = arith.constant 0 : index
      %c128 = arith.constant 128 : index
      %35 = vector.load %arg9[%c0_27, %c128] : memref<3x512xf32, #tpu.memory_space<vmem>>, vector<3x256xf32>
      tpu.vector_store %arg9[%c0_27, %c128], %34 {strides = array<i32>} : memref<3x512xf32, #tpu.memory_space<vmem>>, vector<3x256xf32>,
      %36 = tpu.iota {dimensions = array<i32: 1>} : vector<1x256xi32>
      %c16_i32 = arith.constant 16 : i32
      %c0_i32_28 = arith.constant 0 : i32
      %37 = arith.cmpi eq, %c16_i32, %c0_i32_28 : i32
      %c1_i32 = arith.constant 1 : i32
      %38 = arith.select %37, %c1_i32, %c16_i32 : i32
      %39 = vector.broadcast %38 : i32 to vector<1x256xi32>
      %40 = arith.remsi %36, %39 : vector<1x256xi32>
      %c0_i32_29 = arith.constant 0 : i32
      %41 = vector.broadcast %c0_i32_29 : i32 to vector<1x256xi32>
      %42 = arith.cmpi ne, %40, %41 : vector<1x256xi32>
      %c0_i32_30 = arith.constant 0 : i32
      %43 = vector.broadcast %c0_i32_30 : i32 to vector<1x256xi32>
      %44 = arith.cmpi slt, %40, %43 : vector<1x256xi32>
      %c0_i32_31 = arith.constant 0 : i32
      %45 = arith.cmpi slt, %38, %c0_i32_31 : i32
      %46 = vector.broadcast %45 : i1 to vector<1x256xi1>
      %47 = vector.broadcast %46 : vector<1x256xi1> to vector<1x256xi1>
      %48 = arith.xori %44, %47 : vector<1x256xi1>
      %49 = arith.andi %48, %42 : vector<1x256xi1>
      %50 = vector.broadcast %38 : i32 to vector<1x256xi32>
      %51 = arith.addi %40, %50 : vector<1x256xi32>
      %52 = arith.select %49, %51, %40 : vector<1x256xi1>, vector<1x256xi32>
      %c0_i32_32 = arith.constant 0 : i32
      %53 = vector.broadcast %c0_i32_32 : i32 to vector<1x256xi32>
      %54 = arith.cmpi ne, %52, %53 : vector<1x256xi32>
      %c15_i32 = arith.constant 15 : i32
      %55 = vector.broadcast %c15_i32 : i32 to vector<1x256xi32>
      %56 = arith.cmpi ne, %52, %55 : vector<1x256xi32>
      %c0_33 = arith.constant 0 : index
      %c111 = arith.constant 111 : index
      %57 = vector.load %arg9[%c0_33, %c111] : memref<3x512xf32, #tpu.memory_space<vmem>>, vector<1x256xf32>
      %c0_34 = arith.constant 0 : index
      %58 = memref.load %arg7[%c0_34] : memref<81xf32, #tpu.memory_space<smem>>
      %59 = vector.broadcast %58 : f32 to vector<1x256xf32>
      %60 = arith.mulf %57, %59 : vector<1x256xf32>
      %c0_35 = arith.constant 0 : index
      %c112 = arith.constant 112 : index
      %61 = vector.load %arg9[%c0_35, %c112] : memref<3x512xf32, #tpu.memory_space<vmem>>, vector<1x256xf32>
      %c1 = arith.constant 1 : index
      %62 = memref.load %arg7[%c1] : memref<81xf32, #tpu.memory_space<smem>>
      %63 = vector.broadcast %62 : f32 to vector<1x256xf32>
      %64 = arith.mulf %61, %63 : vector<1x256xf32>
      %c0_36 = arith.constant 0 : index
      %c113 = arith.constant 113 : index
      %65 = vector.load %arg9[%c0_36, %c113] : memref<3x512xf32, #tpu.memory_space<vmem>>, vector<1x256xf32>
      %c2 = arith.constant 2 : index
      %66 = memref.load %arg7[%c2] : memref<81xf32, #tpu.memory_space<smem>>
      %67 = vector.broadcast %66 : f32 to vector<1x256xf32>
      %68 = arith.mulf %65, %67 : vector<1x256xf32>
      %c0_37 = arith.constant 0 : index
      %c127 = arith.constant 127 : index
      %69 = vector.load %arg9[%c0_37, %c127] : memref<3x512xf32, #tpu.memory_space<vmem>>, vector<1x256xf32>
      %c3 = arith.constant 3 : index
      %70 = memref.load %arg7[%c3] : memref<81xf32, #tpu.memory_space<smem>>
      %71 = vector.broadcast %70 : f32 to vector<1x256xf32>
      %72 = arith.mulf %69, %71 : vector<1x256xf32>
      %73 = arith.addf %60, %72 : vector<1x256xf32>
      %c0_38 = arith.constant 0 : index
      %c128_39 = arith.constant 128 : index
      %74 = vector.load %arg9[%c0_38, %c128_39] : memref<3x512xf32, #tpu.memory_space<vmem>>, vector<1x256xf32>
      %c4 = arith.constant 4 : index
      %75 = memref.load %arg7[%c4] : memref<81xf32, #tpu.memory_space<smem>>
      %76 = vector.broadcast %75 : f32 to vector<1x256xf32>
      %77 = arith.mulf %74, %76 : vector<1x256xf32>
      %78 = arith.addf %64, %77 : vector<1x256xf32>
      %c0_40 = arith.constant 0 : index
      %c129 = arith.constant 129 : index
      %79 = vector.load %arg9[%c0_40, %c129] : memref<3x512xf32, #tpu.memory_space<vmem>>, vector<1x256xf32>
      %c5 = arith.constant 5 : index
      %80 = memref.load %arg7[%c5] : memref<81xf32, #tpu.memory_space<smem>>
      %81 = vector.broadcast %80 : f32 to vector<1x256xf32>
      %82 = arith.mulf %79, %81 : vector<1x256xf32>
      %83 = arith.addf %68, %82 : vector<1x256xf32>
      %c0_41 = arith.constant 0 : index
      %c143 = arith.constant 143 : index
      %84 = vector.load %arg9[%c0_41, %c143] : memref<3x512xf32, #tpu.memory_space<vmem>>, vector<1x256xf32>
      %c6 = arith.constant 6 : index
      %85 = memref.load %arg7[%c6] : memref<81xf32, #tpu.memory_space<smem>>
      %86 = vector.broadcast %85 : f32 to vector<1x256xf32>
      %87 = arith.mulf %84, %86 : vector<1x256xf32>
      %88 = arith.addf %73, %87 : vector<1x256xf32>
      %c0_42 = arith.constant 0 : index
      %c144 = arith.constant 144 : index
      %89 = vector.load %arg9[%c0_42, %c144] : memref<3x512xf32, #tpu.memory_space<vmem>>, vector<1x256xf32>
      %c7 = arith.constant 7 : index
      %90 = memref.load %arg7[%c7] : memref<81xf32, #tpu.memory_space<smem>>
      %91 = vector.broadcast %90 : f32 to vector<1x256xf32>
      %92 = arith.mulf %89, %91 : vector<1x256xf32>
      %93 = arith.addf %78, %92 : vector<1x256xf32>
      %c0_43 = arith.constant 0 : index
      %c145 = arith.constant 145 : index
      %94 = vector.load %arg9[%c0_43, %c145] : memref<3x512xf32, #tpu.memory_space<vmem>>, vector<1x256xf32>
      %c8 = arith.constant 8 : index
      %95 = memref.load %arg7[%c8] : memref<81xf32, #tpu.memory_space<smem>>
      %96 = vector.broadcast %95 : f32 to vector<1x256xf32>
      %97 = arith.mulf %94, %96 : vector<1x256xf32>
      %98 = arith.addf %83, %97 : vector<1x256xf32>
      %c1_44 = arith.constant 1 : index
      %c111_45 = arith.constant 111 : index
      %99 = vector.load %arg9[%c1_44, %c111_45] : memref<3x512xf32, #tpu.memory_space<vmem>>, vector<1x256xf32>
      %c9 = arith.constant 9 : index
      %100 = memref.load %arg7[%c9] : memref<81xf32, #tpu.memory_space<smem>>
      %101 = vector.broadcast %100 : f32 to vector<1x256xf32>
      %102 = arith.mulf %99, %101 : vector<1x256xf32>
      %103 = arith.addf %88, %102 : vector<1x256xf32>
      %c1_46 = arith.constant 1 : index
      %c112_47 = arith.constant 112 : index
      %104 = vector.load %arg9[%c1_46, %c112_47] : memref<3x512xf32, #tpu.memory_space<vmem>>, vector<1x256xf32>
      %c10 = arith.constant 10 : index
      %105 = memref.load %arg7[%c10] : memref<81xf32, #tpu.memory_space<smem>>
      %106 = vector.broadcast %105 : f32 to vector<1x256xf32>
      %107 = arith.mulf %104, %106 : vector<1x256xf32>
      %108 = arith.addf %93, %107 : vector<1x256xf32>
      %c1_48 = arith.constant 1 : index
      %c113_49 = arith.constant 113 : index
      %109 = vector.load %arg9[%c1_48, %c113_49] : memref<3x512xf32, #tpu.memory_space<vmem>>, vector<1x256xf32>
      %c11 = arith.constant 11 : index
      %110 = memref.load %arg7[%c11] : memref<81xf32, #tpu.memory_space<smem>>
      %111 = vector.broadcast %110 : f32 to vector<1x256xf32>
      %112 = arith.mulf %109, %111 : vector<1x256xf32>
      %113 = arith.addf %98, %112 : vector<1x256xf32>
      %c1_50 = arith.constant 1 : index
      %c127_51 = arith.constant 127 : index
      %114 = vector.load %arg9[%c1_50, %c127_51] : memref<3x512xf32, #tpu.memory_space<vmem>>, vector<1x256xf32>
      %c12 = arith.constant 12 : index
      %115 = memref.load %arg7[%c12] : memref<81xf32, #tpu.memory_space<smem>>
      %116 = vector.broadcast %115 : f32 to vector<1x256xf32>
      %117 = arith.mulf %114, %116 : vector<1x256xf32>
      %118 = arith.addf %103, %117 : vector<1x256xf32>
      %c1_52 = arith.constant 1 : index
      %c128_53 = arith.constant 128 : index
      %119 = vector.load %arg9[%c1_52, %c128_53] : memref<3x512xf32, #tpu.memory_space<vmem>>, vector<1x256xf32>
      %c13 = arith.constant 13 : index
      %120 = memref.load %arg7[%c13] : memref<81xf32, #tpu.memory_space<smem>>
      %121 = vector.broadcast %120 : f32 to vector<1x256xf32>
      %122 = arith.mulf %119, %121 : vector<1x256xf32>
      %123 = arith.addf %108, %122 : vector<1x256xf32>
      %c1_54 = arith.constant 1 : index
      %c129_55 = arith.constant 129 : index
      %124 = vector.load %arg9[%c1_54, %c129_55] : memref<3x512xf32, #tpu.memory_space<vmem>>, vector<1x256xf32>
      %c14 = arith.constant 14 : index
      %125 = memref.load %arg7[%c14] : memref<81xf32, #tpu.memory_space<smem>>
      %126 = vector.broadcast %125 : f32 to vector<1x256xf32>
      %127 = arith.mulf %124, %126 : vector<1x256xf32>
      %128 = arith.addf %113, %127 : vector<1x256xf32>
      %c1_56 = arith.constant 1 : index
      %c143_57 = arith.constant 143 : index
      %129 = vector.load %arg9[%c1_56, %c143_57] : memref<3x512xf32, #tpu.memory_space<vmem>>, vector<1x256xf32>
      %c15 = arith.constant 15 : index
      %130 = memref.load %arg7[%c15] : memref<81xf32, #tpu.memory_space<smem>>
      %131 = vector.broadcast %130 : f32 to vector<1x256xf32>
      %132 = arith.mulf %129, %131 : vector<1x256xf32>
      %133 = arith.addf %118, %132 : vector<1x256xf32>
      %c1_58 = arith.constant 1 : index
      %c144_59 = arith.constant 144 : index
      %134 = vector.load %arg9[%c1_58, %c144_59] : memref<3x512xf32, #tpu.memory_space<vmem>>, vector<1x256xf32>
      %c16 = arith.constant 16 : index
      %135 = memref.load %arg7[%c16] : memref<81xf32, #tpu.memory_space<smem>>
      %136 = vector.broadcast %135 : f32 to vector<1x256xf32>
      %137 = arith.mulf %134, %136 : vector<1x256xf32>
      %138 = arith.addf %123, %137 : vector<1x256xf32>
      %c1_60 = arith.constant 1 : index
      %c145_61 = arith.constant 145 : index
      %139 = vector.load %arg9[%c1_60, %c145_61] : memref<3x512xf32, #tpu.memory_space<vmem>>, vector<1x256xf32>
      %c17 = arith.constant 17 : index
      %140 = memref.load %arg7[%c17] : memref<81xf32, #tpu.memory_space<smem>>
      %141 = vector.broadcast %140 : f32 to vector<1x256xf32>
      %142 = arith.mulf %139, %141 : vector<1x256xf32>
      %143 = arith.addf %128, %142 : vector<1x256xf32>
      %c2_62 = arith.constant 2 : index
      %c111_63 = arith.constant 111 : index
      %144 = vector.load %arg9[%c2_62, %c111_63] : memref<3x512xf32, #tpu.memory_space<vmem>>, vector<1x256xf32>
      %c18 = arith.constant 18 : index
      %145 = memref.load %arg7[%c18] : memref<81xf32, #tpu.memory_space<smem>>
      %146 = vector.broadcast %145 : f32 to vector<1x256xf32>
      %147 = arith.mulf %144, %146 : vector<1x256xf32>
      %148 = arith.addf %133, %147 : vector<1x256xf32>
      %c2_64 = arith.constant 2 : index
      %c112_65 = arith.constant 112 : index
      %149 = vector.load %arg9[%c2_64, %c112_65] : memref<3x512xf32, #tpu.memory_space<vmem>>, vector<1x256xf32>
      %c19 = arith.constant 19 : index
      %150 = memref.load %arg7[%c19] : memref<81xf32, #tpu.memory_space<smem>>
      %151 = vector.broadcast %150 : f32 to vector<1x256xf32>
      %152 = arith.mulf %149, %151 : vector<1x256xf32>
      %153 = arith.addf %138, %152 : vector<1x256xf32>
      %c2_66 = arith.constant 2 : index
      %c113_67 = arith.constant 113 : index
      %154 = vector.load %arg9[%c2_66, %c113_67] : memref<3x512xf32, #tpu.memory_space<vmem>>, vector<1x256xf32>
      %c20 = arith.constant 20 : index
      %155 = memref.load %arg7[%c20] : memref<81xf32, #tpu.memory_space<smem>>
      %156 = vector.broadcast %155 : f32 to vector<1x256xf32>
      %157 = arith.mulf %154, %156 : vector<1x256xf32>
      %158 = arith.addf %143, %157 : vector<1x256xf32>
      %c2_68 = arith.constant 2 : index
      %c127_69 = arith.constant 127 : index
      %159 = vector.load %arg9[%c2_68, %c127_69] : memref<3x512xf32, #tpu.memory_space<vmem>>, vector<1x256xf32>
      %c21 = arith.constant 21 : index
      %160 = memref.load %arg7[%c21] : memref<81xf32, #tpu.memory_space<smem>>
      %161 = vector.broadcast %160 : f32 to vector<1x256xf32>
      %162 = arith.mulf %159, %161 : vector<1x256xf32>
      %163 = arith.addf %148, %162 : vector<1x256xf32>
      %c2_70 = arith.constant 2 : index
      %c128_71 = arith.constant 128 : index
      %164 = vector.load %arg9[%c2_70, %c128_71] : memref<3x512xf32, #tpu.memory_space<vmem>>, vector<1x256xf32>
      %c22 = arith.constant 22 : index
      %165 = memref.load %arg7[%c22] : memref<81xf32, #tpu.memory_space<smem>>
      %166 = vector.broadcast %165 : f32 to vector<1x256xf32>
      %167 = arith.mulf %164, %166 : vector<1x256xf32>
      %168 = arith.addf %153, %167 : vector<1x256xf32>
      %c2_72 = arith.constant 2 : index
      %c129_73 = arith.constant 129 : index
      %169 = vector.load %arg9[%c2_72, %c129_73] : memref<3x512xf32, #tpu.memory_space<vmem>>, vector<1x256xf32>
      %c23 = arith.constant 23 : index
      %170 = memref.load %arg7[%c23] : memref<81xf32, #tpu.memory_space<smem>>
      %171 = vector.broadcast %170 : f32 to vector<1x256xf32>
      %172 = arith.mulf %169, %171 : vector<1x256xf32>
      %173 = arith.addf %158, %172 : vector<1x256xf32>
      %c2_74 = arith.constant 2 : index
      %c143_75 = arith.constant 143 : index
      %174 = vector.load %arg9[%c2_74, %c143_75] : memref<3x512xf32, #tpu.memory_space<vmem>>, vector<1x256xf32>
      %c24 = arith.constant 24 : index
      %175 = memref.load %arg7[%c24] : memref<81xf32, #tpu.memory_space<smem>>
      %176 = vector.broadcast %175 : f32 to vector<1x256xf32>
      %177 = arith.mulf %174, %176 : vector<1x256xf32>
      %178 = arith.addf %163, %177 : vector<1x256xf32>
      %c2_76 = arith.constant 2 : index
      %c144_77 = arith.constant 144 : index
      %179 = vector.load %arg9[%c2_76, %c144_77] : memref<3x512xf32, #tpu.memory_space<vmem>>, vector<1x256xf32>
      %c25 = arith.constant 25 : index
      %180 = memref.load %arg7[%c25] : memref<81xf32, #tpu.memory_space<smem>>
      %181 = vector.broadcast %180 : f32 to vector<1x256xf32>
      %182 = arith.mulf %179, %181 : vector<1x256xf32>
      %183 = arith.addf %168, %182 : vector<1x256xf32>
      %c2_78 = arith.constant 2 : index
      %c145_79 = arith.constant 145 : index
      %184 = vector.load %arg9[%c2_78, %c145_79] : memref<3x512xf32, #tpu.memory_space<vmem>>, vector<1x256xf32>
      %c26 = arith.constant 26 : index
      %185 = memref.load %arg7[%c26] : memref<81xf32, #tpu.memory_space<smem>>
      %186 = vector.broadcast %185 : f32 to vector<1x256xf32>
      %187 = arith.mulf %184, %186 : vector<1x256xf32>
      %188 = arith.addf %173, %187 : vector<1x256xf32>
      %cst_80 = arith.constant 0.000000e+00 : f32
      %189 = vector.broadcast %cst_80 : f32 to vector<1x256xf32>
      %190 = arith.select %54, %178, %189 : vector<1x256xi1>, vector<1x256xf32>
      %191 = arith.addf %190, %183 : vector<1x256xf32>
      %cst_81 = arith.constant 0.000000e+00 : f32
      %192 = vector.broadcast %cst_81 : f32 to vector<1x256xf32>
      %193 = arith.select %56, %188, %192 : vector<1x256xi1>, vector<1x256xf32>
      %194 = arith.addf %191, %193 : vector<1x256xf32>
      %c0_82 = arith.constant 0 : index
      %c0_83 = arith.constant 0 : index
      %195 = vector.load %arg10[%c0_82, %c0_83] : memref<3x256xf32, #tpu.memory_space<vmem>>, vector<1x256xf32>
      tpu.vector_store %arg10[%c0_82, %c0_83], %194 {strides = array<i32>} : memref<3x256xf32, #tpu.memory_space<vmem>>, vector<1x256xf32>,
      %c0_84 = arith.constant 0 : index
      %c111_85 = arith.constant 111 : index
      %196 = vector.load %arg9[%c0_84, %c111_85] : memref<3x512xf32, #tpu.memory_space<vmem>>, vector<1x256xf32>
      %c27 = arith.constant 27 : index
      %197 = memref.load %arg7[%c27] : memref<81xf32, #tpu.memory_space<smem>>
      %198 = vector.broadcast %197 : f32 to vector<1x256xf32>
      %199 = arith.mulf %196, %198 : vector<1x256xf32>
      %c0_86 = arith.constant 0 : index
      %c112_87 = arith.constant 112 : index
      %200 = vector.load %arg9[%c0_86, %c112_87] : memref<3x512xf32, #tpu.memory_space<vmem>>, vector<1x256xf32>
      %c28 = arith.constant 28 : index
      %201 = memref.load %arg7[%c28] : memref<81xf32, #tpu.memory_space<smem>>
      %202 = vector.broadcast %201 : f32 to vector<1x256xf32>
      %203 = arith.mulf %200, %202 : vector<1x256xf32>
      %c0_88 = arith.constant 0 : index
      %c113_89 = arith.constant 113 : index
      %204 = vector.load %arg9[%c0_88, %c113_89] : memref<3x512xf32, #tpu.memory_space<vmem>>, vector<1x256xf32>
      %c29 = arith.constant 29 : index
      %205 = memref.load %arg7[%c29] : memref<81xf32, #tpu.memory_space<smem>>
      %206 = vector.broadcast %205 : f32 to vector<1x256xf32>
      %207 = arith.mulf %204, %206 : vector<1x256xf32>
      %c0_90 = arith.constant 0 : index
      %c127_91 = arith.constant 127 : index
      %208 = vector.load %arg9[%c0_90, %c127_91] : memref<3x512xf32, #tpu.memory_space<vmem>>, vector<1x256xf32>
      %c30 = arith.constant 30 : index
      %209 = memref.load %arg7[%c30] : memref<81xf32, #tpu.memory_space<smem>>
      %210 = vector.broadcast %209 : f32 to vector<1x256xf32>
      %211 = arith.mulf %208, %210 : vector<1x256xf32>
      %212 = arith.addf %199, %211 : vector<1x256xf32>
      %c0_92 = arith.constant 0 : index
      %c128_93 = arith.constant 128 : index
      %213 = vector.load %arg9[%c0_92, %c128_93] : memref<3x512xf32, #tpu.memory_space<vmem>>, vector<1x256xf32>
      %c31 = arith.constant 31 : index
      %214 = memref.load %arg7[%c31] : memref<81xf32, #tpu.memory_space<smem>>
      %215 = vector.broadcast %214 : f32 to vector<1x256xf32>
      %216 = arith.mulf %213, %215 : vector<1x256xf32>
      %217 = arith.addf %203, %216 : vector<1x256xf32>
      %c0_94 = arith.constant 0 : index
      %c129_95 = arith.constant 129 : index
      %218 = vector.load %arg9[%c0_94, %c129_95] : memref<3x512xf32, #tpu.memory_space<vmem>>, vector<1x256xf32>
      %c32 = arith.constant 32 : index
      %219 = memref.load %arg7[%c32] : memref<81xf32, #tpu.memory_space<smem>>
      %220 = vector.broadcast %219 : f32 to vector<1x256xf32>
      %221 = arith.mulf %218, %220 : vector<1x256xf32>
      %222 = arith.addf %207, %221 : vector<1x256xf32>
      %c0_96 = arith.constant 0 : index
      %c143_97 = arith.constant 143 : index
      %223 = vector.load %arg9[%c0_96, %c143_97] : memref<3x512xf32, #tpu.memory_space<vmem>>, vector<1x256xf32>
      %c33 = arith.constant 33 : index
      %224 = memref.load %arg7[%c33] : memref<81xf32, #tpu.memory_space<smem>>
      %225 = vector.broadcast %224 : f32 to vector<1x256xf32>
      %226 = arith.mulf %223, %225 : vector<1x256xf32>
      %227 = arith.addf %212, %226 : vector<1x256xf32>
      %c0_98 = arith.constant 0 : index
      %c144_99 = arith.constant 144 : index
      %228 = vector.load %arg9[%c0_98, %c144_99] : memref<3x512xf32, #tpu.memory_space<vmem>>, vector<1x256xf32>
      %c34 = arith.constant 34 : index
      %229 = memref.load %arg7[%c34] : memref<81xf32, #tpu.memory_space<smem>>
      %230 = vector.broadcast %229 : f32 to vector<1x256xf32>
      %231 = arith.mulf %228, %230 : vector<1x256xf32>
      %232 = arith.addf %217, %231 : vector<1x256xf32>
      %c0_100 = arith.constant 0 : index
      %c145_101 = arith.constant 145 : index
      %233 = vector.load %arg9[%c0_100, %c145_101] : memref<3x512xf32, #tpu.memory_space<vmem>>, vector<1x256xf32>
      %c35 = arith.constant 35 : index
      %234 = memref.load %arg7[%c35] : memref<81xf32, #tpu.memory_space<smem>>
      %235 = vector.broadcast %234 : f32 to vector<1x256xf32>
      %236 = arith.mulf %233, %235 : vector<1x256xf32>
      %237 = arith.addf %222, %236 : vector<1x256xf32>
      %c1_102 = arith.constant 1 : index
      %c111_103 = arith.constant 111 : index
      %238 = vector.load %arg9[%c1_102, %c111_103] : memref<3x512xf32, #tpu.memory_space<vmem>>, vector<1x256xf32>
      %c36 = arith.constant 36 : index
      %239 = memref.load %arg7[%c36] : memref<81xf32, #tpu.memory_space<smem>>
      %240 = vector.broadcast %239 : f32 to vector<1x256xf32>
      %241 = arith.mulf %238, %240 : vector<1x256xf32>
      %242 = arith.addf %227, %241 : vector<1x256xf32>
      %c1_104 = arith.constant 1 : index
      %c112_105 = arith.constant 112 : index
      %243 = vector.load %arg9[%c1_104, %c112_105] : memref<3x512xf32, #tpu.memory_space<vmem>>, vector<1x256xf32>
      %c37 = arith.constant 37 : index
      %244 = memref.load %arg7[%c37] : memref<81xf32, #tpu.memory_space<smem>>
      %245 = vector.broadcast %244 : f32 to vector<1x256xf32>
      %246 = arith.mulf %243, %245 : vector<1x256xf32>
      %247 = arith.addf %232, %246 : vector<1x256xf32>
      %c1_106 = arith.constant 1 : index
      %c113_107 = arith.constant 113 : index
      %248 = vector.load %arg9[%c1_106, %c113_107] : memref<3x512xf32, #tpu.memory_space<vmem>>, vector<1x256xf32>
      %c38 = arith.constant 38 : index
      %249 = memref.load %arg7[%c38] : memref<81xf32, #tpu.memory_space<smem>>
      %250 = vector.broadcast %249 : f32 to vector<1x256xf32>
      %251 = arith.mulf %248, %250 : vector<1x256xf32>
      %252 = arith.addf %237, %251 : vector<1x256xf32>
      %c1_108 = arith.constant 1 : index
      %c127_109 = arith.constant 127 : index
      %253 = vector.load %arg9[%c1_108, %c127_109] : memref<3x512xf32, #tpu.memory_space<vmem>>, vector<1x256xf32>
      %c39 = arith.constant 39 : index
      %254 = memref.load %arg7[%c39] : memref<81xf32, #tpu.memory_space<smem>>
      %255 = vector.broadcast %254 : f32 to vector<1x256xf32>
      %256 = arith.mulf %253, %255 : vector<1x256xf32>
      %257 = arith.addf %242, %256 : vector<1x256xf32>
      %c1_110 = arith.constant 1 : index
      %c128_111 = arith.constant 128 : index
      %258 = vector.load %arg9[%c1_110, %c128_111] : memref<3x512xf32, #tpu.memory_space<vmem>>, vector<1x256xf32>
      %c40 = arith.constant 40 : index
      %259 = memref.load %arg7[%c40] : memref<81xf32, #tpu.memory_space<smem>>
      %260 = vector.broadcast %259 : f32 to vector<1x256xf32>
      %261 = arith.mulf %258, %260 : vector<1x256xf32>
      %262 = arith.addf %247, %261 : vector<1x256xf32>
      %c1_112 = arith.constant 1 : index
      %c129_113 = arith.constant 129 : index
      %263 = vector.load %arg9[%c1_112, %c129_113] : memref<3x512xf32, #tpu.memory_space<vmem>>, vector<1x256xf32>
      %c41 = arith.constant 41 : index
      %264 = memref.load %arg7[%c41] : memref<81xf32, #tpu.memory_space<smem>>
      %265 = vector.broadcast %264 : f32 to vector<1x256xf32>
      %266 = arith.mulf %263, %265 : vector<1x256xf32>
      %267 = arith.addf %252, %266 : vector<1x256xf32>
      %c1_114 = arith.constant 1 : index
      %c143_115 = arith.constant 143 : index
      %268 = vector.load %arg9[%c1_114, %c143_115] : memref<3x512xf32, #tpu.memory_space<vmem>>, vector<1x256xf32>
      %c42 = arith.constant 42 : index
      %269 = memref.load %arg7[%c42] : memref<81xf32, #tpu.memory_space<smem>>
      %270 = vector.broadcast %269 : f32 to vector<1x256xf32>
      %271 = arith.mulf %268, %270 : vector<1x256xf32>
      %272 = arith.addf %257, %271 : vector<1x256xf32>
      %c1_116 = arith.constant 1 : index
      %c144_117 = arith.constant 144 : index
      %273 = vector.load %arg9[%c1_116, %c144_117] : memref<3x512xf32, #tpu.memory_space<vmem>>, vector<1x256xf32>
      %c43 = arith.constant 43 : index
      %274 = memref.load %arg7[%c43] : memref<81xf32, #tpu.memory_space<smem>>
      %275 = vector.broadcast %274 : f32 to vector<1x256xf32>
      %276 = arith.mulf %273, %275 : vector<1x256xf32>
      %277 = arith.addf %262, %276 : vector<1x256xf32>
      %c1_118 = arith.constant 1 : index
      %c145_119 = arith.constant 145 : index
      %278 = vector.load %arg9[%c1_118, %c145_119] : memref<3x512xf32, #tpu.memory_space<vmem>>, vector<1x256xf32>
      %c44 = arith.constant 44 : index
      %279 = memref.load %arg7[%c44] : memref<81xf32, #tpu.memory_space<smem>>
      %280 = vector.broadcast %279 : f32 to vector<1x256xf32>
      %281 = arith.mulf %278, %280 : vector<1x256xf32>
      %282 = arith.addf %267, %281 : vector<1x256xf32>
      %c2_120 = arith.constant 2 : index
      %c111_121 = arith.constant 111 : index
      %283 = vector.load %arg9[%c2_120, %c111_121] : memref<3x512xf32, #tpu.memory_space<vmem>>, vector<1x256xf32>
      %c45 = arith.constant 45 : index
      %284 = memref.load %arg7[%c45] : memref<81xf32, #tpu.memory_space<smem>>
      %285 = vector.broadcast %284 : f32 to vector<1x256xf32>
      %286 = arith.mulf %283, %285 : vector<1x256xf32>
      %287 = arith.addf %272, %286 : vector<1x256xf32>
      %c2_122 = arith.constant 2 : index
      %c112_123 = arith.constant 112 : index
      %288 = vector.load %arg9[%c2_122, %c112_123] : memref<3x512xf32, #tpu.memory_space<vmem>>, vector<1x256xf32>
      %c46 = arith.constant 46 : index
      %289 = memref.load %arg7[%c46] : memref<81xf32, #tpu.memory_space<smem>>
      %290 = vector.broadcast %289 : f32 to vector<1x256xf32>
      %291 = arith.mulf %288, %290 : vector<1x256xf32>
      %292 = arith.addf %277, %291 : vector<1x256xf32>
      %c2_124 = arith.constant 2 : index
      %c113_125 = arith.constant 113 : index
      %293 = vector.load %arg9[%c2_124, %c113_125] : memref<3x512xf32, #tpu.memory_space<vmem>>, vector<1x256xf32>
      %c47 = arith.constant 47 : index
      %294 = memref.load %arg7[%c47] : memref<81xf32, #tpu.memory_space<smem>>
      %295 = vector.broadcast %294 : f32 to vector<1x256xf32>
      %296 = arith.mulf %293, %295 : vector<1x256xf32>
      %297 = arith.addf %282, %296 : vector<1x256xf32>
      %c2_126 = arith.constant 2 : index
      %c127_127 = arith.constant 127 : index
      %298 = vector.load %arg9[%c2_126, %c127_127] : memref<3x512xf32, #tpu.memory_space<vmem>>, vector<1x256xf32>
      %c48 = arith.constant 48 : index
      %299 = memref.load %arg7[%c48] : memref<81xf32, #tpu.memory_space<smem>>
      %300 = vector.broadcast %299 : f32 to vector<1x256xf32>
      %301 = arith.mulf %298, %300 : vector<1x256xf32>
      %302 = arith.addf %287, %301 : vector<1x256xf32>
      %c2_128 = arith.constant 2 : index
      %c128_129 = arith.constant 128 : index
      %303 = vector.load %arg9[%c2_128, %c128_129] : memref<3x512xf32, #tpu.memory_space<vmem>>, vector<1x256xf32>
      %c49 = arith.constant 49 : index
      %304 = memref.load %arg7[%c49] : memref<81xf32, #tpu.memory_space<smem>>
      %305 = vector.broadcast %304 : f32 to vector<1x256xf32>
      %306 = arith.mulf %303, %305 : vector<1x256xf32>
      %307 = arith.addf %292, %306 : vector<1x256xf32>
      %c2_130 = arith.constant 2 : index
      %c129_131 = arith.constant 129 : index
      %308 = vector.load %arg9[%c2_130, %c129_131] : memref<3x512xf32, #tpu.memory_space<vmem>>, vector<1x256xf32>
      %c50 = arith.constant 50 : index
      %309 = memref.load %arg7[%c50] : memref<81xf32, #tpu.memory_space<smem>>
      %310 = vector.broadcast %309 : f32 to vector<1x256xf32>
      %311 = arith.mulf %308, %310 : vector<1x256xf32>
      %312 = arith.addf %297, %311 : vector<1x256xf32>
      %c2_132 = arith.constant 2 : index
      %c143_133 = arith.constant 143 : index
      %313 = vector.load %arg9[%c2_132, %c143_133] : memref<3x512xf32, #tpu.memory_space<vmem>>, vector<1x256xf32>
      %c51 = arith.constant 51 : index
      %314 = memref.load %arg7[%c51] : memref<81xf32, #tpu.memory_space<smem>>
      %315 = vector.broadcast %314 : f32 to vector<1x256xf32>
      %316 = arith.mulf %313, %315 : vector<1x256xf32>
      %317 = arith.addf %302, %316 : vector<1x256xf32>
      %c2_134 = arith.constant 2 : index
      %c144_135 = arith.constant 144 : index
      %318 = vector.load %arg9[%c2_134, %c144_135] : memref<3x512xf32, #tpu.memory_space<vmem>>, vector<1x256xf32>
      %c52 = arith.constant 52 : index
      %319 = memref.load %arg7[%c52] : memref<81xf32, #tpu.memory_space<smem>>
      %320 = vector.broadcast %319 : f32 to vector<1x256xf32>
      %321 = arith.mulf %318, %320 : vector<1x256xf32>
      %322 = arith.addf %307, %321 : vector<1x256xf32>
      %c2_136 = arith.constant 2 : index
      %c145_137 = arith.constant 145 : index
      %323 = vector.load %arg9[%c2_136, %c145_137] : memref<3x512xf32, #tpu.memory_space<vmem>>, vector<1x256xf32>
      %c53 = arith.constant 53 : index
      %324 = memref.load %arg7[%c53] : memref<81xf32, #tpu.memory_space<smem>>
      %325 = vector.broadcast %324 : f32 to vector<1x256xf32>
      %326 = arith.mulf %323, %325 : vector<1x256xf32>
      %327 = arith.addf %312, %326 : vector<1x256xf32>
      %cst_138 = arith.constant 0.000000e+00 : f32
      %328 = vector.broadcast %cst_138 : f32 to vector<1x256xf32>
      %329 = arith.select %54, %317, %328 : vector<1x256xi1>, vector<1x256xf32>
      %330 = arith.addf %329, %322 : vector<1x256xf32>
      %cst_139 = arith.constant 0.000000e+00 : f32
      %331 = vector.broadcast %cst_139 : f32 to vector<1x256xf32>
      %332 = arith.select %56, %327, %331 : vector<1x256xi1>, vector<1x256xf32>
      %333 = arith.addf %330, %332 : vector<1x256xf32>
      %c1_140 = arith.constant 1 : index
      %c0_141 = arith.constant 0 : index
      %334 = vector.load %arg10[%c1_140, %c0_141] : memref<3x256xf32, #tpu.memory_space<vmem>>, vector<1x256xf32>
      tpu.vector_store %arg10[%c1_140, %c0_141], %333 {strides = array<i32>} : memref<3x256xf32, #tpu.memory_space<vmem>>, vector<1x256xf32>,
      %c0_142 = arith.constant 0 : index
      %c111_143 = arith.constant 111 : index
      %335 = vector.load %arg9[%c0_142, %c111_143] : memref<3x512xf32, #tpu.memory_space<vmem>>, vector<1x256xf32>
      %c54 = arith.constant 54 : index
      %336 = memref.load %arg7[%c54] : memref<81xf32, #tpu.memory_space<smem>>
      %337 = vector.broadcast %336 : f32 to vector<1x256xf32>
      %338 = arith.mulf %335, %337 : vector<1x256xf32>
      %c0_144 = arith.constant 0 : index
      %c112_145 = arith.constant 112 : index
      %339 = vector.load %arg9[%c0_144, %c112_145] : memref<3x512xf32, #tpu.memory_space<vmem>>, vector<1x256xf32>
      %c55 = arith.constant 55 : index
      %340 = memref.load %arg7[%c55] : memref<81xf32, #tpu.memory_space<smem>>
      %341 = vector.broadcast %340 : f32 to vector<1x256xf32>
      %342 = arith.mulf %339, %341 : vector<1x256xf32>
      %c0_146 = arith.constant 0 : index
      %c113_147 = arith.constant 113 : index
      %343 = vector.load %arg9[%c0_146, %c113_147] : memref<3x512xf32, #tpu.memory_space<vmem>>, vector<1x256xf32>
      %c56 = arith.constant 56 : index
      %344 = memref.load %arg7[%c56] : memref<81xf32, #tpu.memory_space<smem>>
      %345 = vector.broadcast %344 : f32 to vector<1x256xf32>
      %346 = arith.mulf %343, %345 : vector<1x256xf32>
      %c0_148 = arith.constant 0 : index
      %c127_149 = arith.constant 127 : index
      %347 = vector.load %arg9[%c0_148, %c127_149] : memref<3x512xf32, #tpu.memory_space<vmem>>, vector<1x256xf32>
      %c57 = arith.constant 57 : index
      %348 = memref.load %arg7[%c57] : memref<81xf32, #tpu.memory_space<smem>>
      %349 = vector.broadcast %348 : f32 to vector<1x256xf32>
      %350 = arith.mulf %347, %349 : vector<1x256xf32>
      %351 = arith.addf %338, %350 : vector<1x256xf32>
      %c0_150 = arith.constant 0 : index
      %c128_151 = arith.constant 128 : index
      %352 = vector.load %arg9[%c0_150, %c128_151] : memref<3x512xf32, #tpu.memory_space<vmem>>, vector<1x256xf32>
      %c58 = arith.constant 58 : index
      %353 = memref.load %arg7[%c58] : memref<81xf32, #tpu.memory_space<smem>>
      %354 = vector.broadcast %353 : f32 to vector<1x256xf32>
      %355 = arith.mulf %352, %354 : vector<1x256xf32>
      %356 = arith.addf %342, %355 : vector<1x256xf32>
      %c0_152 = arith.constant 0 : index
      %c129_153 = arith.constant 129 : index
      %357 = vector.load %arg9[%c0_152, %c129_153] : memref<3x512xf32, #tpu.memory_space<vmem>>, vector<1x256xf32>
      %c59 = arith.constant 59 : index
      %358 = memref.load %arg7[%c59] : memref<81xf32, #tpu.memory_space<smem>>
      %359 = vector.broadcast %358 : f32 to vector<1x256xf32>
      %360 = arith.mulf %357, %359 : vector<1x256xf32>
      %361 = arith.addf %346, %360 : vector<1x256xf32>
      %c0_154 = arith.constant 0 : index
      %c143_155 = arith.constant 143 : index
      %362 = vector.load %arg9[%c0_154, %c143_155] : memref<3x512xf32, #tpu.memory_space<vmem>>, vector<1x256xf32>
      %c60 = arith.constant 60 : index
      %363 = memref.load %arg7[%c60] : memref<81xf32, #tpu.memory_space<smem>>
      %364 = vector.broadcast %363 : f32 to vector<1x256xf32>
      %365 = arith.mulf %362, %364 : vector<1x256xf32>
      %366 = arith.addf %351, %365 : vector<1x256xf32>
      %c0_156 = arith.constant 0 : index
      %c144_157 = arith.constant 144 : index
      %367 = vector.load %arg9[%c0_156, %c144_157] : memref<3x512xf32, #tpu.memory_space<vmem>>, vector<1x256xf32>
      %c61 = arith.constant 61 : index
      %368 = memref.load %arg7[%c61] : memref<81xf32, #tpu.memory_space<smem>>
      %369 = vector.broadcast %368 : f32 to vector<1x256xf32>
      %370 = arith.mulf %367, %369 : vector<1x256xf32>
      %371 = arith.addf %356, %370 : vector<1x256xf32>
      %c0_158 = arith.constant 0 : index
      %c145_159 = arith.constant 145 : index
      %372 = vector.load %arg9[%c0_158, %c145_159] : memref<3x512xf32, #tpu.memory_space<vmem>>, vector<1x256xf32>
      %c62 = arith.constant 62 : index
      %373 = memref.load %arg7[%c62] : memref<81xf32, #tpu.memory_space<smem>>
      %374 = vector.broadcast %373 : f32 to vector<1x256xf32>
      %375 = arith.mulf %372, %374 : vector<1x256xf32>
      %376 = arith.addf %361, %375 : vector<1x256xf32>
      %c1_160 = arith.constant 1 : index
      %c111_161 = arith.constant 111 : index
      %377 = vector.load %arg9[%c1_160, %c111_161] : memref<3x512xf32, #tpu.memory_space<vmem>>, vector<1x256xf32>
      %c63 = arith.constant 63 : index
      %378 = memref.load %arg7[%c63] : memref<81xf32, #tpu.memory_space<smem>>
      %379 = vector.broadcast %378 : f32 to vector<1x256xf32>
      %380 = arith.mulf %377, %379 : vector<1x256xf32>
      %381 = arith.addf %366, %380 : vector<1x256xf32>
      %c1_162 = arith.constant 1 : index
      %c112_163 = arith.constant 112 : index
      %382 = vector.load %arg9[%c1_162, %c112_163] : memref<3x512xf32, #tpu.memory_space<vmem>>, vector<1x256xf32>
      %c64 = arith.constant 64 : index
      %383 = memref.load %arg7[%c64] : memref<81xf32, #tpu.memory_space<smem>>
      %384 = vector.broadcast %383 : f32 to vector<1x256xf32>
      %385 = arith.mulf %382, %384 : vector<1x256xf32>
      %386 = arith.addf %371, %385 : vector<1x256xf32>
      %c1_164 = arith.constant 1 : index
      %c113_165 = arith.constant 113 : index
      %387 = vector.load %arg9[%c1_164, %c113_165] : memref<3x512xf32, #tpu.memory_space<vmem>>, vector<1x256xf32>
      %c65 = arith.constant 65 : index
      %388 = memref.load %arg7[%c65] : memref<81xf32, #tpu.memory_space<smem>>
      %389 = vector.broadcast %388 : f32 to vector<1x256xf32>
      %390 = arith.mulf %387, %389 : vector<1x256xf32>
      %391 = arith.addf %376, %390 : vector<1x256xf32>
      %c1_166 = arith.constant 1 : index
      %c127_167 = arith.constant 127 : index
      %392 = vector.load %arg9[%c1_166, %c127_167] : memref<3x512xf32, #tpu.memory_space<vmem>>, vector<1x256xf32>
      %c66 = arith.constant 66 : index
      %393 = memref.load %arg7[%c66] : memref<81xf32, #tpu.memory_space<smem>>
      %394 = vector.broadcast %393 : f32 to vector<1x256xf32>
      %395 = arith.mulf %392, %394 : vector<1x256xf32>
      %396 = arith.addf %381, %395 : vector<1x256xf32>
      %c1_168 = arith.constant 1 : index
      %c128_169 = arith.constant 128 : index
      %397 = vector.load %arg9[%c1_168, %c128_169] : memref<3x512xf32, #tpu.memory_space<vmem>>, vector<1x256xf32>
      %c67 = arith.constant 67 : index
      %398 = memref.load %arg7[%c67] : memref<81xf32, #tpu.memory_space<smem>>
      %399 = vector.broadcast %398 : f32 to vector<1x256xf32>
      %400 = arith.mulf %397, %399 : vector<1x256xf32>
      %401 = arith.addf %386, %400 : vector<1x256xf32>
      %c1_170 = arith.constant 1 : index
      %c129_171 = arith.constant 129 : index
      %402 = vector.load %arg9[%c1_170, %c129_171] : memref<3x512xf32, #tpu.memory_space<vmem>>, vector<1x256xf32>
      %c68 = arith.constant 68 : index
      %403 = memref.load %arg7[%c68] : memref<81xf32, #tpu.memory_space<smem>>
      %404 = vector.broadcast %403 : f32 to vector<1x256xf32>
      %405 = arith.mulf %402, %404 : vector<1x256xf32>
      %406 = arith.addf %391, %405 : vector<1x256xf32>
      %c1_172 = arith.constant 1 : index
      %c143_173 = arith.constant 143 : index
      %407 = vector.load %arg9[%c1_172, %c143_173] : memref<3x512xf32, #tpu.memory_space<vmem>>, vector<1x256xf32>
      %c69 = arith.constant 69 : index
      %408 = memref.load %arg7[%c69] : memref<81xf32, #tpu.memory_space<smem>>
      %409 = vector.broadcast %408 : f32 to vector<1x256xf32>
      %410 = arith.mulf %407, %409 : vector<1x256xf32>
      %411 = arith.addf %396, %410 : vector<1x256xf32>
      %c1_174 = arith.constant 1 : index
      %c144_175 = arith.constant 144 : index
      %412 = vector.load %arg9[%c1_174, %c144_175] : memref<3x512xf32, #tpu.memory_space<vmem>>, vector<1x256xf32>
      %c70 = arith.constant 70 : index
      %413 = memref.load %arg7[%c70] : memref<81xf32, #tpu.memory_space<smem>>
      %414 = vector.broadcast %413 : f32 to vector<1x256xf32>
      %415 = arith.mulf %412, %414 : vector<1x256xf32>
      %416 = arith.addf %401, %415 : vector<1x256xf32>
      %c1_176 = arith.constant 1 : index
      %c145_177 = arith.constant 145 : index
      %417 = vector.load %arg9[%c1_176, %c145_177] : memref<3x512xf32, #tpu.memory_space<vmem>>, vector<1x256xf32>
      %c71 = arith.constant 71 : index
      %418 = memref.load %arg7[%c71] : memref<81xf32, #tpu.memory_space<smem>>
      %419 = vector.broadcast %418 : f32 to vector<1x256xf32>
      %420 = arith.mulf %417, %419 : vector<1x256xf32>
      %421 = arith.addf %406, %420 : vector<1x256xf32>
      %c2_178 = arith.constant 2 : index
      %c111_179 = arith.constant 111 : index
      %422 = vector.load %arg9[%c2_178, %c111_179] : memref<3x512xf32, #tpu.memory_space<vmem>>, vector<1x256xf32>
      %c72 = arith.constant 72 : index
      %423 = memref.load %arg7[%c72] : memref<81xf32, #tpu.memory_space<smem>>
      %424 = vector.broadcast %423 : f32 to vector<1x256xf32>
      %425 = arith.mulf %422, %424 : vector<1x256xf32>
      %426 = arith.addf %411, %425 : vector<1x256xf32>
      %c2_180 = arith.constant 2 : index
      %c112_181 = arith.constant 112 : index
      %427 = vector.load %arg9[%c2_180, %c112_181] : memref<3x512xf32, #tpu.memory_space<vmem>>, vector<1x256xf32>
      %c73 = arith.constant 73 : index
      %428 = memref.load %arg7[%c73] : memref<81xf32, #tpu.memory_space<smem>>
      %429 = vector.broadcast %428 : f32 to vector<1x256xf32>
      %430 = arith.mulf %427, %429 : vector<1x256xf32>
      %431 = arith.addf %416, %430 : vector<1x256xf32>
      %c2_182 = arith.constant 2 : index
      %c113_183 = arith.constant 113 : index
      %432 = vector.load %arg9[%c2_182, %c113_183] : memref<3x512xf32, #tpu.memory_space<vmem>>, vector<1x256xf32>
      %c74 = arith.constant 74 : index
      %433 = memref.load %arg7[%c74] : memref<81xf32, #tpu.memory_space<smem>>
      %434 = vector.broadcast %433 : f32 to vector<1x256xf32>
      %435 = arith.mulf %432, %434 : vector<1x256xf32>
      %436 = arith.addf %421, %435 : vector<1x256xf32>
      %c2_184 = arith.constant 2 : index
      %c127_185 = arith.constant 127 : index
      %437 = vector.load %arg9[%c2_184, %c127_185] : memref<3x512xf32, #tpu.memory_space<vmem>>, vector<1x256xf32>
      %c75 = arith.constant 75 : index
      %438 = memref.load %arg7[%c75] : memref<81xf32, #tpu.memory_space<smem>>
      %439 = vector.broadcast %438 : f32 to vector<1x256xf32>
      %440 = arith.mulf %437, %439 : vector<1x256xf32>
      %441 = arith.addf %426, %440 : vector<1x256xf32>
      %c2_186 = arith.constant 2 : index
      %c128_187 = arith.constant 128 : index
      %442 = vector.load %arg9[%c2_186, %c128_187] : memref<3x512xf32, #tpu.memory_space<vmem>>, vector<1x256xf32>
      %c76 = arith.constant 76 : index
      %443 = memref.load %arg7[%c76] : memref<81xf32, #tpu.memory_space<smem>>
      %444 = vector.broadcast %443 : f32 to vector<1x256xf32>
      %445 = arith.mulf %442, %444 : vector<1x256xf32>
      %446 = arith.addf %431, %445 : vector<1x256xf32>
      %c2_188 = arith.constant 2 : index
      %c129_189 = arith.constant 129 : index
      %447 = vector.load %arg9[%c2_188, %c129_189] : memref<3x512xf32, #tpu.memory_space<vmem>>, vector<1x256xf32>
      %c77 = arith.constant 77 : index
      %448 = memref.load %arg7[%c77] : memref<81xf32, #tpu.memory_space<smem>>
      %449 = vector.broadcast %448 : f32 to vector<1x256xf32>
      %450 = arith.mulf %447, %449 : vector<1x256xf32>
      %451 = arith.addf %436, %450 : vector<1x256xf32>
      %c2_190 = arith.constant 2 : index
      %c143_191 = arith.constant 143 : index
      %452 = vector.load %arg9[%c2_190, %c143_191] : memref<3x512xf32, #tpu.memory_space<vmem>>, vector<1x256xf32>
      %c78 = arith.constant 78 : index
      %453 = memref.load %arg7[%c78] : memref<81xf32, #tpu.memory_space<smem>>
      %454 = vector.broadcast %453 : f32 to vector<1x256xf32>
      %455 = arith.mulf %452, %454 : vector<1x256xf32>
      %456 = arith.addf %441, %455 : vector<1x256xf32>
      %c2_192 = arith.constant 2 : index
      %c144_193 = arith.constant 144 : index
      %457 = vector.load %arg9[%c2_192, %c144_193] : memref<3x512xf32, #tpu.memory_space<vmem>>, vector<1x256xf32>
      %c79 = arith.constant 79 : index
      %458 = memref.load %arg7[%c79] : memref<81xf32, #tpu.memory_space<smem>>
      %459 = vector.broadcast %458 : f32 to vector<1x256xf32>
      %460 = arith.mulf %457, %459 : vector<1x256xf32>
      %461 = arith.addf %446, %460 : vector<1x256xf32>
      %c2_194 = arith.constant 2 : index
      %c145_195 = arith.constant 145 : index
      %462 = vector.load %arg9[%c2_194, %c145_195] : memref<3x512xf32, #tpu.memory_space<vmem>>, vector<1x256xf32>
      %c80 = arith.constant 80 : index
      %463 = memref.load %arg7[%c80] : memref<81xf32, #tpu.memory_space<smem>>
      %464 = vector.broadcast %463 : f32 to vector<1x256xf32>
      %465 = arith.mulf %462, %464 : vector<1x256xf32>
      %466 = arith.addf %451, %465 : vector<1x256xf32>
      %cst_196 = arith.constant 0.000000e+00 : f32
      %467 = vector.broadcast %cst_196 : f32 to vector<1x256xf32>
      %468 = arith.select %54, %456, %467 : vector<1x256xi1>, vector<1x256xf32>
      %469 = arith.addf %468, %461 : vector<1x256xf32>
      %cst_197 = arith.constant 0.000000e+00 : f32
      %470 = vector.broadcast %cst_197 : f32 to vector<1x256xf32>
      %471 = arith.select %56, %466, %470 : vector<1x256xi1>, vector<1x256xf32>
      %472 = arith.addf %469, %471 : vector<1x256xf32>
      %c2_198 = arith.constant 2 : index
      %c0_199 = arith.constant 0 : index
      %473 = vector.load %arg10[%c2_198, %c0_199] : memref<3x256xf32, #tpu.memory_space<vmem>>, vector<1x256xf32>
      tpu.vector_store %arg10[%c2_198, %c0_199], %472 {strides = array<i32>} : memref<3x256xf32, #tpu.memory_space<vmem>>, vector<1x256xf32>,
    } else {
    }
    %c0 = arith.constant 0 : index
    %c0_1 = arith.constant 0 : index
    %c0_2 = arith.constant 0 : index
    %c0_3 = arith.constant 0 : index
    %3 = vector.load %arg4[%c0, %c0_1, %c0_2, %c0_3] : memref<1x1x8x3xf32, #tpu.memory_space<vmem>>, vector<1x1x8x3xf32>
    %4 = vector.shape_cast %3 : vector<1x1x8x3xf32> to vector<8x3xf32>
    %c0_4 = arith.constant 0 : index
    %c0_5 = arith.constant 0 : index
    %c0_6 = arith.constant 0 : index
    %5 = vector.load %arg3[%c0_4, %c0_5, %c0_6] : memref<1x8x3xf32, #tpu.memory_space<vmem>>, vector<1x8x3xf32>
    %6 = vector.shape_cast %5 : vector<1x8x3xf32> to vector<8x3xf32>
    %7 = arith.subf %4, %6 : vector<8x3xf32>
    %cst = arith.constant dense<0.000000e+00> : vector<3xf32>
    %8 = vector.multi_reduction <add>, %7, %cst [0] : vector<8x3xf32> to vector<3xf32>
    %9 = vector.shape_cast %8 : vector<3xf32> to vector<1x3xf32>
    %cst_7 = arith.constant 8.000000e+00 : f32
    %10 = vector.broadcast %cst_7 : f32 to vector<1x3xf32>
    %11 = arith.divf %9, %10 : vector<1x3xf32>
    %c0_8 = arith.constant 0 : index
    %c0_9 = arith.constant 0 : index
    %12 = vector.load %arg5[%c0_8, %c0_9] : memref<3x3xf32, #tpu.memory_space<vmem>>, vector<3x3xf32>
    %13 = vector.broadcast %11 : vector<1x3xf32> to vector<3x3xf32>
    %14 = arith.mulf %12, %13 : vector<3x3xf32>
    %cst_10 = arith.constant dense<0.000000e+00> : vector<3xf32>
    %15 = vector.multi_reduction <add>, %14, %cst_10 [1] : vector<3x3xf32> to vector<3xf32>
    %16 = vector.shape_cast %15 : vector<3xf32> to vector<3x1xf32>
    %c0_11 = arith.constant 0 : index
    %c0_12 = arith.constant 0 : index
    %17 = vector.load %arg6[%c0_11, %c0_12] : memref<3x1xf32, #tpu.memory_space<vmem>>, vector<3x1xf32>
    %18 = arith.addf %16, %17 : vector<3x1xf32>
    %c0_13 = arith.constant 0 : index
    %c0_14 = arith.constant 0 : index
    %19 = vector.load %arg10[%c0_13, %c0_14] : memref<3x256xf32, #tpu.memory_space<vmem>>, vector<3x256xf32>
    %20 = vector.broadcast %18 : vector<3x1xf32> to vector<3x256xf32>
    %21 = arith.addf %19, %20 : vector<3x256xf32>
    %22 = arith.negf %21 : vector<3x256xf32>
    %23 = math.exp %22 : vector<3x256xf32>
    %cst_15 = arith.constant 1.000000e+00 : f32
    %24 = vector.broadcast %cst_15 : f32 to vector<3x256xf32>
    %25 = arith.addf %24, %23 : vector<3x256xf32>
    %26 = arith.divf %24, %25 : vector<3x256xf32>
    %c0_16 = arith.constant 0 : index
    %c0_17 = arith.constant 0 : index
    %c0_18 = arith.constant 0 : index
    %c0_19 = arith.constant 0 : index
    %27 = vector.load %arg8[%c0_16, %c0_17, %c0_18, %c0_19] : memref<1x1x3x256xf32, #tpu.memory_space<vmem>>, vector<1x1x3x256xf32>
    %28 = vector.shape_cast %27 : vector<1x1x3x256xf32> to vector<3x256xf32>
    %29 = vector.shape_cast %26 : vector<3x256xf32> to vector<1x1x3x256xf32>
    tpu.vector_store %arg8[%c0_16, %c0_17, %c0_18, %c0_19], %29 {strides = array<i32>} : memref<1x1x3x256xf32, #tpu.memory_space<vmem>>, vector<1x1x3x256xf32>,
    return
  }
  func.func @transform_0(%arg0: i32, %arg1: i32) -> (i32, i32, i32) {
    %c0_i32 = arith.constant 0 : i32
    %c0_i32_0 = arith.constant 0 : i32
    %c0_i32_1 = arith.constant 0 : i32
    return %arg0, %c0_i32, %c0_i32_0 : i32, i32, i32
  }
  func.func @transform_1(%arg0: i32, %arg1: i32) -> (i32, i32, i32) {
    %c0_i32 = arith.constant 0 : i32
    %c0_i32_0 = arith.constant 0 : i32
    %c0_i32_1 = arith.constant 0 : i32
    return %arg0, %c0_i32, %c0_i32_0 : i32, i32, i32
  }
  func.func @transform_2(%arg0: i32, %arg1: i32) -> (i32, i32, i32, i32) {
    %c0_i32 = arith.constant 0 : i32
    %c0_i32_0 = arith.constant 0 : i32
    %c0_i32_1 = arith.constant 0 : i32
    return %arg0, %arg1, %c0_i32, %c0_i32_0 : i32, i32, i32, i32
  }
  func.func @transform_3(%arg0: i32, %arg1: i32) -> (i32, i32) {
    %c0_i32 = arith.constant 0 : i32
    %c0_i32_0 = arith.constant 0 : i32
    %c0_i32_1 = arith.constant 0 : i32
    return %c0_i32, %c0_i32_0 : i32, i32
  }
  func.func @transform_4(%arg0: i32, %arg1: i32) -> (i32, i32) {
    %c0_i32 = arith.constant 0 : i32
    %c0_i32_0 = arith.constant 0 : i32
    %c0_i32_1 = arith.constant 0 : i32
    return %c0_i32, %c0_i32_0 : i32, i32
  }
  func.func @transform_5(%arg0: i32, %arg1: i32) -> i32 {
    %c0_i32 = arith.constant 0 : i32
    %c0_i32_0 = arith.constant 0 : i32
    return %c0_i32 : i32
  }
  func.func @transform_6(%arg0: i32, %arg1: i32) -> (i32, i32, i32, i32) {
    %c0_i32 = arith.constant 0 : i32
    %c0_i32_0 = arith.constant 0 : i32
    %c0_i32_1 = arith.constant 0 : i32
    return %arg0, %arg1, %c0_i32, %c0_i32_0 : i32, i32, i32, i32
  }
}

</mosaic_0001>

<llo_original>
// kernel: full_generator_forward.1
$region0: #{full_generator_forward.1}
  #allocation0 [shape = 'u32[]', space=smem, size = 0x4, offset = 0x4, fixed_abs, tag = 'smem constant byte address 0x4 - core index']
  #allocation1 [shape = 'u32[72,128]{1,0:T(1,128)}', space=vmem, size = 0x9000, scoped, tag = 'internal scratch']
  #allocation2 [shape = 'f32[3,512]{1,0:T(4,128)}', space=vmem, size = 0x2000, scoped, tag = 'scratch operand']
  #allocation3 [shape = 'f32[3,256]{1,0:T(4,128)}', space=vmem, size = 0x1000, scoped, tag = 'scratch operand']
  %s0 = inlined_call_operand.vmem [shape: f32[2,3,256], index: 0, kind: input, shape index: {}]
  %s1 = inlined_call_operand.vmem [shape: f32[2,8,3], index: 1, kind: input, shape index: {}]
  %s2 = inlined_call_operand.vmem [shape: f32[2,2,8,3], index: 2, kind: input, shape index: {}]
  %s3 = inlined_call_operand.vmem [shape: f32[3,3], index: 3, kind: input, shape index: {}]
  %s4 = inlined_call_operand.vmem [shape: f32[3,1], index: 4, kind: input, shape index: {}]
  %s5 = inlined_call_operand.vmem [shape: f32[81], index: 5, kind: input, shape index: {}]
  %s6 = inlined_call_operand.vmem [shape: f32[2,2,3,256], index: 6, kind: output, shape index: {}]
  %s7 = sld [smem:[#allocation0]]
  $region65: #{full_generator_forward.1} parent=0
    _
  %s9 = ssub.s32 1, %s7
  %s10 = scalar_select 0, %s9, %s7
  $region1: #{full_generator_forward.1} parent=0
    #allocation4 [shape = 'u8[512]{0}', space=smem, size = 0x200, scoped, tag = 'input window, operand 5, single buffered']
    #allocation5 [shape = 's32[2]{0}', space=sflag, size = 0x8, scoped, tag = 'scoped memory for full_generator_forward.1']
    %11 = vsyncpa [#allocation5], 0
    loop: start=0, step=1, limit=6
    $region2: #{full_generator_forward.1} parent=1 // loop_pre_header
      _
    $region3: #{full_generator_forward.1} parent=1 // loop_header
      %s13 = sphi 0, %s17
      %p14 = scmp.ge.s32.totalorder %s13, 6
      %s20 = sphi 0, %s32
      %s21 = sphi 0, %s28
      %s22 = sphi 0, %s20
      %s23 = sphi 0, %s21
      %s24 = sphi 0, %s22
      %s25 = sphi 0, %s23
      %s35 = sphi 0, %s37
      %s38 = sphi 0, %s35
      %s39 = sphi 0, %s38
      %s55 = sphi 0, %s39
      %s61 = sphi 0, %s63
      %s64 = sphi 0, %s61
      %s65 = sphi 0, %s64
      %s81 = sphi 0, %s65
      %s89 = sphi 0, %s91
      %s92 = sphi 0, %s89
      %s93 = sphi 0, %s92
      %s109 = sphi 0, %s93
      %s113 = sphi 0, %s113
      %s115 = sphi 0, %s113
      %s116 = sphi 0, %s115
      %s130 = sphi 0, %s116
      %s134 = sphi 0, %s134
      %s136 = sphi 0, %s134
      %s137 = sphi 0, %s136
      %s151 = sphi 0, %s137
      %s155 = sphi 0, %s155
      %s157 = sphi 0, %s155
      %s158 = sphi 0, %s157
      %s172 = sphi 0, %s158
      %s180 = sphi 0, %s182
      %s183 = sphi 0, %s180
      %s184 = sphi 0, %s183
      %s200 = sphi 0, %s184
    $region4: #{full_generator_forward.1} parent=1 // loop_header_branch
      %16 = sbr.rel (%p14) target = $region8
    $region5: #{full_generator_forward.1} parent=1 // loop_body
      %s18 = ssub.s32 %s13, 1
      %s19 = ssub.s32 %s13, 2
      %s26 = sadd.s32 1, %s21
      %p27 = scmp.ge.s32.totalorder %s26, 2
      %s28 = scalar_select %p27, 0, %s26
      %s29 = sadd.s32 1, %s20
      %s30 = scalar_select %p27, %s29, %s20
      %p31 = scmp.ge.s32.totalorder %s30, 2
      %s32 = scalar_select %p31, 0, %s30
      %s33 = ssub.s32 %s20, %s32
      %p34 = scmp.eq.s32.totalorder %s33, 0
      %s36 = sadd.s32 %s35, 1
      %s37 = scalar_select %p34, %s35, %s36
      %p40 = pneg %p34
      %p41 = scmp.eq.s32.totalorder %s13, 3
      %p42 = por %p40, %p41
      %p43 = scmp.ne.s32.totalorder %s35, %s38
      %p44 = scmp.eq.s32.totalorder %s13, 0
      %p45 = por %p43, %p44
      %p46 = scmp.ne.s32.totalorder %s35, %s38
      %p47 = scmp.eq.s32.totalorder %s18, 3
      %p48 = por %p46, %p47
      %p49 = scmp.ne.s32.totalorder %s38, %s39
      %p50 = scmp.eq.s32.totalorder %s18, 0
      %p51 = por %p49, %p50
      %p52 = scmp.ne.s32.totalorder %s38, %s39
      %p53 = scmp.eq.s32.totalorder %s19, 3
      %p54 = por %p52, %p53
      %p56 = scmp.ne.s32.totalorder %s39, %s55
      %p57 = scmp.eq.s32.totalorder %s19, 0
      %p58 = por %p56, %p57
      %s59 = ssub.s32 %s20, %s32
      %p60 = scmp.eq.s32.totalorder %s59, 0
      %s62 = sadd.s32 %s61, 1
      %s63 = scalar_select %p60, %s61, %s62
      %p66 = pneg %p60
      %p67 = scmp.eq.s32.totalorder %s13, 3
      %p68 = por %p66, %p67
      %p69 = scmp.ne.s32.totalorder %s61, %s64
      %p70 = scmp.eq.s32.totalorder %s13, 0
      %p71 = por %p69, %p70
      %p72 = scmp.ne.s32.totalorder %s61, %s64
      %p73 = scmp.eq.s32.totalorder %s18, 3
      %p74 = por %p72, %p73
      %p75 = scmp.ne.s32.totalorder %s64, %s65
      %p76 = scmp.eq.s32.totalorder %s18, 0
      %p77 = por %p75, %p76
      %p78 = scmp.ne.s32.totalorder %s64, %s65
      %p79 = scmp.eq.s32.totalorder %s19, 3
      %p80 = por %p78, %p79
      %p82 = scmp.ne.s32.totalorder %s65, %s81
      %p83 = scmp.eq.s32.totalorder %s19, 0
      %p84 = por %p82, %p83
      %s85 = ssub.s32 %s20, %s32
      %s86 = ssub.s32 %s21, %s28
      %s87 = sor.u32 %s85, %s86
      %p88 = scmp.eq.s32.totalorder %s87, 0
      %s90 = sadd.s32 %s89, 1
      %s91 = scalar_select %p88, %s89, %s90
      %p94 = pneg %p88
      %p95 = scmp.eq.s32.totalorder %s13, 3
      %p96 = por %p94, %p95
      %p97 = scmp.ne.s32.totalorder %s89, %s92
      %p98 = scmp.eq.s32.totalorder %s13, 0
      %p99 = por %p97, %p98
      %p100 = scmp.ne.s32.totalorder %s89, %s92
      %p101 = scmp.eq.s32.totalorder %s18, 3
      %p102 = por %p100, %p101
      %p103 = scmp.ne.s32.totalorder %s92, %s93
      %p104 = scmp.eq.s32.totalorder %s18, 0
      %p105 = por %p103, %p104
      %p106 = scmp.ne.s32.totalorder %s92, %s93
      %p107 = scmp.eq.s32.totalorder %s19, 3
      %p108 = por %p106, %p107
      %p110 = scmp.ne.s32.totalorder %s93, %s109
      %p111 = scmp.eq.s32.totalorder %s19, 0
      %p112 = por %p110, %p111
      %s114 = sadd.s32 %s113, 1
      %p117 = scmp.eq.s32.totalorder %s13, 3
      %p118 = scmp.ne.s32.totalorder %s113, %s115
      %p119 = scmp.eq.s32.totalorder %s13, 0
      %p120 = por %p118, %p119
      %p121 = scmp.ne.s32.totalorder %s113, %s115
      %p122 = scmp.eq.s32.totalorder %s18, 3
      %p123 = por %p121, %p122
      %p124 = scmp.ne.s32.totalorder %s115, %s116
      %p125 = scmp.eq.s32.totalorder %s18, 0
      %p126 = por %p124, %p125
      %p127 = scmp.ne.s32.totalorder %s115, %s116
      %p128 = scmp.eq.s32.totalorder %s19, 3
      %p129 = por %p127, %p128
      %p131 = scmp.ne.s32.totalorder %s116, %s130
      %p132 = scmp.eq.s32.totalorder %s19, 0
      %p133 = por %p131, %p132
      %s135 = sadd.s32 %s134, 1
      %p138 = scmp.eq.s32.totalorder %s13, 3
      %p139 = scmp.ne.s32.totalorder %s134, %s136
      %p140 = scmp.eq.s32.totalorder %s13, 0
      %p141 = por %p139, %p140
      %p142 = scmp.ne.s32.totalorder %s134, %s136
      %p143 = scmp.eq.s32.totalorder %s18, 3
      %p144 = por %p142, %p143
      %p145 = scmp.ne.s32.totalorder %s136, %s137
      %p146 = scmp.eq.s32.totalorder %s18, 0
      %p147 = por %p145, %p146
      %p148 = scmp.ne.s32.totalorder %s136, %s137
      %p149 = scmp.eq.s32.totalorder %s19, 3
      %p150 = por %p148, %p149
      %p152 = scmp.ne.s32.totalorder %s137, %s151
      %p153 = scmp.eq.s32.totalorder %s19, 0
      %p154 = por %p152, %p153
      %s156 = sadd.s32 %s155, 1
      %p159 = scmp.eq.s32.totalorder %s13, 3
      %p160 = scmp.ne.s32.totalorder %s155, %s157
      %p161 = scmp.eq.s32.totalorder %s13, 0
      %p162 = por %p160, %p161
      %p163 = scmp.ne.s32.totalorder %s155, %s157
      %p164 = scmp.eq.s32.totalorder %s18, 3
      %p165 = por %p163, %p164
      %p166 = scmp.ne.s32.totalorder %s157, %s158
      %p167 = scmp.eq.s32.totalorder %s18, 0
      %p168 = por %p166, %p167
      %p169 = scmp.ne.s32.totalorder %s157, %s158
      %p170 = scmp.eq.s32.totalorder %s19, 3
      %p171 = por %p169, %p170
      %p173 = scmp.ne.s32.totalorder %s158, %s172
      %p174 = scmp.eq.s32.totalorder %s19, 0
      %p175 = por %p173, %p174
      %s176 = ssub.s32 %s20, %s32
      %s177 = ssub.s32 %s21, %s28
      %s178 = sor.u32 %s176, %s177
      %p179 = scmp.eq.s32.totalorder %s178, 0
      %s181 = sadd.s32 %s180, 1
      %s182 = scalar_select %p179, %s180, %s181
      %p185 = pneg %p179
      %p186 = scmp.eq.s32.totalorder %s13, 3
      %p187 = por %p185, %p186
      %p188 = scmp.ne.s32.totalorder %s180, %s183
      %p189 = scmp.eq.s32.totalorder %s13, 0
      %p190 = por %p188, %p189
      %p191 = scmp.ne.s32.totalorder %s180, %s183
      %p192 = scmp.eq.s32.totalorder %s18, 3
      %p193 = por %p191, %p192
      %p194 = scmp.ne.s32.totalorder %s183, %s184
      %p195 = scmp.eq.s32.totalorder %s18, 0
      %p196 = por %p194, %p195
      %p197 = scmp.ne.s32.totalorder %s183, %s184
      %p198 = scmp.eq.s32.totalorder %s19, 3
      %p199 = por %p197, %p198
      %p201 = scmp.ne.s32.totalorder %s184, %s200
      %p202 = scmp.eq.s32.totalorder %s19, 0
      %p203 = por %p201, %p202
      %p204 = scmp.le.s32.totalorder 1, %s13
      %p205 = scmp.lt.s32.totalorder %s13, 5
      %p206 = pnand %p204, %p205
      %p207 = pneg %p206
      // Predicated region
      $region9: #{full_generator_forward.1} parent=5 // pred_check
        _
      $region10: #{full_generator_forward.1} parent=5 // pred_check_branch
        %209 = sbr.rel (%p206) target = $region12
      $region11: #{full_generator_forward.1} parent=5 // pred_region
        %s210 = ssub.s32 %s13, 1
        // Predicated region
        $region13: #{full_generator_forward.1} parent=11 // pred_check
          %p211 = pneg %p126
        $region14: #{full_generator_forward.1} parent=11 // pred_check_branch
          %213 = sbr.rel (%p211) target = $region16
        $region15: #{full_generator_forward.1} parent=11 // pred_region
          _
        $region16: #{full_generator_forward.1} parent=11 // pred_fallthru
          _
        // Predicated region
        $region17: #{full_generator_forward.1} parent=11 // pred_check
          %p214 = pneg %p147
        $region18: #{full_generator_forward.1} parent=11 // pred_check_branch
          %216 = sbr.rel (%p214) target = $region20
        $region19: #{full_generator_forward.1} parent=11 // pred_region
          _
        $region20: #{full_generator_forward.1} parent=11 // pred_fallthru
          _
        // Predicated region
        $region21: #{full_generator_forward.1} parent=11 // pred_check
          %p217 = pneg %p168
        $region22: #{full_generator_forward.1} parent=11 // pred_check_branch
          %219 = sbr.rel (%p217) target = $region24
        $region23: #{full_generator_forward.1} parent=11 // pred_region
          %221 = vsyncadd [#allocation5], 0
          %s223 = sshll.u32 %s5, 4
          %s224 = int_to_ptr.vmem [resolvable:$true] %s223
          %226 = dma.vmem_to_smem %s224, 16, [#allocation4], [#allocation5]
        $region24: #{full_generator_forward.1} parent=11 // pred_fallthru
          _
      $region12: #{full_generator_forward.1} parent=5 // pred_fallthru
        _
      %p227 = scmp.lt.s32.totalorder %s13, 4
      // Predicated region
      $region25: #{full_generator_forward.1} parent=5 // pred_check
        %p228 = pneg %p227
      $region26: #{full_generator_forward.1} parent=5 // pred_check_branch
        %230 = sbr.rel (%p228) target = $region28
      $region27: #{full_generator_forward.1} parent=5 // pred_region
        // Predicated region
        $region29: #{full_generator_forward.1} parent=27 // pred_check
          %p231 = pneg %p45
        $region30: #{full_generator_forward.1} parent=27 // pred_check_branch
          %233 = sbr.rel (%p231) target = $region32
        $region31: #{full_generator_forward.1} parent=27 // pred_region
          %p234 = scmp.lt.s32.totalorder %s20, 1
          %s235 = scalar_select %p234, %s20, 1
          %s236 = smul.addr %s235, 2
          %s237 = smul.addr %s236, 4
          %s238 = scalar_lea.vmem %s0, %s237
        $region32: #{full_generator_forward.1} parent=27 // pred_fallthru
          _
        // Predicated region
        $region33: #{full_generator_forward.1} parent=27 // pred_check
          %p239 = pneg %p71
        $region34: #{full_generator_forward.1} parent=27 // pred_check_branch
          %241 = sbr.rel (%p239) target = $region36
        $region35: #{full_generator_forward.1} parent=27 // pred_region
          %p242 = scmp.lt.s32.totalorder %s20, 1
          %s243 = scalar_select %p242, %s20, 1
          %s244 = smul.addr %s243, 8
          %s245 = scalar_lea.vmem %s1, %s244
        $region36: #{full_generator_forward.1} parent=27 // pred_fallthru
          _
        // Predicated region
        $region37: #{full_generator_forward.1} parent=27 // pred_check
          %p246 = pneg %p99
        $region38: #{full_generator_forward.1} parent=27 // pred_check_branch
          %248 = sbr.rel (%p246) target = $region40
        $region39: #{full_generator_forward.1} parent=27 // pred_region
          %p249 = scmp.lt.s32.totalorder %s20, 1
          %s250 = scalar_select %p249, %s20, 1
          %p251 = scmp.lt.s32.totalorder %s21, 1
          %s252 = scalar_select %p251, %s21, 1
          %s253 = smul.addr %s250, 2
          %s254 = sadd.s32 %s252, %s253
          %s255 = smul.addr %s254, 8
          %s256 = scalar_lea.vmem %s2, %s255
        $region40: #{full_generator_forward.1} parent=27 // pred_fallthru
          _
      $region28: #{full_generator_forward.1} parent=5 // pred_fallthru
        _
      %p257 = scmp.le.s32.totalorder 1, %s13
      %p258 = scmp.lt.s32.totalorder %s13, 5
      %p259 = pnand %p257, %p258
      %p260 = pneg %p259
      // Predicated region
      $region41: #{full_generator_forward.1} parent=5 // pred_check
        _
      $region42: #{full_generator_forward.1} parent=5 // pred_check_branch
        %262 = sbr.rel (%p259) target = $region44
      $region43: #{full_generator_forward.1} parent=5 // pred_region
        %s263 = ssub.s32 %s13, 1
        // Predicated region
        $region45: #{full_generator_forward.1} parent=43 // pred_check
          %p264 = pneg %p168
        $region46: #{full_generator_forward.1} parent=43 // pred_check_branch
          %266 = sbr.rel (%p264) target = $region48
        $region47: #{full_generator_forward.1} parent=43 // pred_region
          %268 = dma.done [#allocation5], 16
        $region48: #{full_generator_forward.1} parent=43 // pred_fallthru
          _
        %269 = sfence
        %p270 = scmp.lt.s32.totalorder %s22, 1
        %s271 = scalar_select %p270, %s22, 1
        %s272 = smul.addr %s271, 2
        %s273 = smul.addr %s272, 4
        %s274 = scalar_lea.vmem %s0, %s273
        %p275 = pneg %p51
        %p276 = pneg %p48
        %p277 = scmp.lt.s32.totalorder %s22, 1
        %s278 = scalar_select %p277, %s22, 1
        %s279 = smul.addr %s278, 8
        %s280 = scalar_lea.vmem %s1, %s279
        %p281 = pneg %p77
        %p282 = pneg %p74
        %p283 = scmp.lt.s32.totalorder %s22, 1
        %s284 = scalar_select %p283, %s22, 1
        %p285 = scmp.lt.s32.totalorder %s23, 1
        %s286 = scalar_select %p285, %s23, 1
        %s287 = smul.addr %s284, 2
        %s288 = sadd.s32 %s286, %s287
        %s289 = smul.addr %s288, 8
        %s290 = scalar_lea.vmem %s2, %s289
        %p291 = pneg %p105
        %p292 = pneg %p102
        %p293 = pneg %p126
        %p294 = pneg %p123
        %p295 = pneg %p147
        %p296 = pneg %p144
        %p297 = pneg %p168
        %p298 = pneg %p165
        %p299 = pneg %p196
        %p300 = pneg %p193
        %p301 = scmp.lt.s32.totalorder %s22, 1
        %s302 = scalar_select %p301, %s22, 1
        %p303 = scmp.lt.s32.totalorder %s23, 1
        %s304 = scalar_select %p303, %s23, 1
        %s305 = smul.addr %s304, 2
        %s306 = smul.addr %s302, 4
        %s307 = sadd.s32 %s305, %s306
        %s308 = smul.addr %s307, 4
        %s309 = scalar_lea.vmem %s6, %s308
        %p310 = scmp.lt.s32.totalorder %s22, 1
        %s311 = scalar_select %p310, %s22, 1
        %s312 = smul.addr %s311, 2
        %s313 = smul.addr %s312, 4
        %s314 = scalar_lea.vmem %s0, %s313
        %p315 = scmp.lt.s32.totalorder %s22, 1
        %s316 = scalar_select %p315, %s22, 1
        %s317 = smul.addr %s316, 8
        %s318 = scalar_lea.vmem %s1, %s317
        %p319 = scmp.lt.s32.totalorder %s22, 1
        %s320 = scalar_select %p319, %s22, 1
        %p321 = scmp.lt.s32.totalorder %s23, 1
        %s322 = scalar_select %p321, %s23, 1
        %s323 = smul.addr %s320, 2
        %s324 = sadd.s32 %s322, %s323
        %s325 = smul.addr %s324, 8
        %s326 = scalar_lea.vmem %s2, %s325
        %p327 = scmp.lt.s32.totalorder %s22, 1
        %s328 = scalar_select %p327, %s22, 1
        %p329 = scmp.lt.s32.totalorder %s23, 1
        %s330 = scalar_select %p329, %s23, 1
        %s331 = smul.addr %s330, 2
        %s332 = smul.addr %s328, 4
        %s333 = sadd.s32 %s331, %s332
        %s334 = smul.addr %s333, 4
        %s335 = scalar_lea.vmem %s6, %s334
        %p336 = scmp.eq.s32.totalorder %s23, 0
        // Predicated region
        $region49: #{full_generator_forward.1} parent=43 // pred_check
          %p337 = pneg %p336
        $region50: #{full_generator_forward.1} parent=43 // pred_check_branch
          %339 = sbr.rel (%p337) target = $region52
        $region51: #{full_generator_forward.1} parent=43 // pred_region
          %340 = vst [vmem:[#allocation2] sm:$0x7] 0.0
          %341 = vst [vmem:[#allocation2 + $0xc] sm:$0x7] 0.0
          %v342 = vld [vmem:[%s314] sm:$0x77]
          %343 = vst [vmem:[#allocation2 + $0x4] sm:$0x77] %v342
          %v344 = vlaneseq
          %v345 = vand.u32 %v344, 127
          %v346 = vadd.s32 %v345, 128
          %vm347 = vcmp.lt.s32.totalorder %v345, 0
          %v348 = vsub.s32 0, %v345
          %v349 = vsel %vm347, %v348, %v345
          %v350 = vshrl.u32 %v349, 4
          %v351 = vand.u32 %v349, 15
          %v352 = vsub.s32 0, %v351
          %v353 = vsel %vm347, %v352, %v351
          %vm354 = vcmp.lt.s32.totalorder %v346, 0
          %v355 = vsub.s32 0, %v346
          %v356 = vsel %vm354, %v355, %v346
          %v357 = vshrl.u32 %v356, 4
          %v358 = vand.u32 %v356, 15
          %v359 = vsub.s32 0, %v358
          %v360 = vsel %vm354, %v359, %v358
          %vm361 = vcmp.ne.s32.totalorder %v353, 0
          %vm362 = vcmp.ne.s32.totalorder %v360, 0
          %vm363 = vcmp.lt.s32.totalorder %v353, 0
          %vm364 = vcmp.lt.s32.totalorder %v360, 0
          %vm365 = vmand %vm363, %vm361
          %vm366 = vmand %vm364, %vm362
          %v367 = vadd.s32 %v353, 16
          %v368 = vadd.s32 %v360, 16
          %v369 = vsel %vm365, %v367, %v353
          %v370 = vsel %vm366, %v368, %v360
          %vm371 = vcmp.ne.s32.totalorder %v369, 0
          %vm372 = vcmp.ne.s32.totalorder %v370, 0
          %vm373 = vcmp.ne.s32.totalorder %v369, 15
          %vm374 = vcmp.ne.s32.totalorder %v370, 15
          %v375 = vld [vmem:[#allocation2] ss:$4 sm:$0x7]
          %s376 = sld [smem:[#allocation4]]
          %v377 = vstv %s376
          %v378 = vmul.f32 %v375, %v377
          %s379 = sld [smem:[#allocation4 + $0x1]]
          %v380 = vstv %s379
          %v381 = vmul.f32 %v375, %v380
          %s382 = sld [smem:[#allocation4 + $0x2]]
          %v383 = vstv %s382
          %v384 = vmul.f32 %v375, %v383
          %s385 = sld [smem:[#allocation4 + $0x3]]
          %v386 = vstv %s385
          %v387 = vmul.f32 %v375, %v386
          %389 = vrot.lane.b32.xlu0 %v387, 112
          %v390 = vpop.permute.xlu0 %389
          %v391 = vrot.slane %v390, 1
          %vm392 = vcmask 916480
          %v393 = vsel %vm392, %v390, %v391
          %v395 = vadd.f32 %v378, %v393
          %s396 = scalar_lea.vmem [#allocation2], 4
          %v397 = vld [vmem:[%s396] ss:$4 sm:$0x3]
          %s398 = sld [smem:[#allocation4 + $0x4]]
          %v399 = vstv %s398
          %v400 = vmul.f32 %v397, %v399
          %402 = vrot.lane.b32.xlu0 %v400, 112
          %v403 = vpop.permute.xlu0 %402
          %v404 = vrot.slane %v403, 7
          %v405 = vsel %vm392, %v404, %v403
          %v407 = vadd.f32 %v381, %v405
          %v408 = vld [vmem:[%s396] ss:$4 sm:$0x7]
          %s409 = sld [smem:[#allocation4 + $0x5]]
          %v410 = vstv %s409
          %v411 = vmul.f32 %v408, %v410
          %413 = vrot.lane.b32.xlu0 %v411, 112
          %v414 = vpop.permute.xlu0 %413
          %v415 = vrot.slane %v414, 7
          %v416 = vsel %vm392, %v415, %v414
          %v418 = vadd.f32 %v384, %v416
          %s419 = sld [smem:[#allocation4 + $0x6]]
          %v420 = vstv %s419
          %v421 = vmul.f32 %v408, %v420
          %423 = vrot.lane.b32.xlu0 %v421, 96
          %v424 = vpop.permute.xlu0 %423
          %v425 = vrot.slane %v424, 7
          %vm426 = vcmask 785408
          %v427 = vsel %vm426, %v425, %v424
          %v429 = vadd.f32 %v395, %v427
          %s430 = sld [smem:[#allocation4 + $0x7]]
          %v431 = vstv %s430
          %v432 = vmul.f32 %v408, %v431
          %434 = vrot.lane.b32.xlu0 %v432, 96
          %v435 = vpop.permute.xlu0 %434
          %v436 = vrot.slane %v435, 7
          %v437 = vsel %vm426, %v436, %v435
          %v439 = vadd.f32 %v407, %v437
          %s440 = sld [smem:[#allocation4 + $0x8]]
          %v441 = vstv %s440
          %v442 = vmul.f32 %v408, %v441
          %444 = vrot.lane.b32.xlu0 %v442, 96
          %v445 = vpop.permute.xlu0 %444
          %v446 = vrot.slane %v445, 7
          %v447 = vsel %vm426, %v446, %v445
          %v449 = vadd.f32 %v418, %v447
          %s450 = scalar_lea.vmem [#allocation2], 1
          %v451 = vld [vmem:[%s450] ss:$4 sm:$0x7]
          %s452 = sld [smem:[#allocation4 + $0x9]]
          %v453 = vstv %s452
          %v454 = vmul.f32 %v451, %v453
          %v455 = vadd.f32 %v429, %v454
          %s456 = sld [smem:[#allocation4 + $0xa]]
          %v457 = vstv %s456
          %v458 = vmul.f32 %v451, %v457
          %v459 = vadd.f32 %v439, %v458
          %s460 = sld [smem:[#allocation4 + $0xb]]
          %v461 = vstv %s460
          %v462 = vmul.f32 %v451, %v461
          %v463 = vadd.f32 %v449, %v462
          %s464 = sld [smem:[#allocation4 + $0xc]]
          %v465 = vstv %s464
          %v466 = vmul.f32 %v451, %v465
          %468 = vrot.lane.b32.xlu0 %v466, 112
          %v469 = vpop.permute.xlu0 %468
          %v470 = vrot.slane %v469, 1
          %v471 = vsel %vm392, %v469, %v470
          %v473 = vadd.f32 %v455, %v471
          %s474 = scalar_lea.vmem [#allocation2], 5
          %v475 = vld [vmem:[%s474] ss:$4 sm:$0x3]
          %s476 = sld [smem:[#allocation4 + $0xd]]
          %v477 = vstv %s476
          %v478 = vmul.f32 %v475, %v477
          %480 = vrot.lane.b32.xlu0 %v478, 112
          %v481 = vpop.permute.xlu0 %480
          %v482 = vrot.slane %v481, 7
          %v483 = vsel %vm392, %v482, %v481
          %v485 = vadd.f32 %v459, %v483
          %v486 = vld [vmem:[%s474] ss:$4 sm:$0x7]
          %s487 = sld [smem:[#allocation4 + $0xe]]
          %v488 = vstv %s487
          %v489 = vmul.f32 %v486, %v488
          %491 = vrot.lane.b32.xlu0 %v489, 112
          %v492 = vpop.permute.xlu0 %491
          %v493 = vrot.slane %v492, 7
          %v494 = vsel %vm392, %v493, %v492
          %v496 = vadd.f32 %v463, %v494
          %s497 = sld [smem:[#allocation4 + $0xf]]
          %v498 = vstv %s497
          %v499 = vmul.f32 %v486, %v498
          %501 = vrot.lane.b32.xlu0 %v499, 96
          %v502 = vpop.permute.xlu0 %501
          %v503 = vrot.slane %v502, 7
          %v504 = vsel %vm426, %v503, %v502
          %v506 = vadd.f32 %v473, %v504
          %s507 = sld [smem:[#allocation4 + $0x10]]
          %v508 = vstv %s507
          %v509 = vmul.f32 %v486, %v508
          %511 = vrot.lane.b32.xlu0 %v509, 96
          %v512 = vpop.permute.xlu0 %511
          %v513 = vrot.slane %v512, 7
          %v514 = vsel %vm426, %v513, %v512
          %v516 = vadd.f32 %v485, %v514
          %s517 = sld [smem:[#allocation4 + $0x11]]
          %v518 = vstv %s517
          %v519 = vmul.f32 %v486, %v518
          %521 = vrot.lane.b32.xlu0 %v519, 96
          %v522 = vpop.permute.xlu0 %521
          %v523 = vrot.slane %v522, 7
          %v524 = vsel %vm426, %v523, %v522
          %v526 = vadd.f32 %v496, %v524
          %s527 = scalar_lea.vmem [#allocation2], 2
          %v528 = vld [vmem:[%s527] ss:$4 sm:$0x7]
          %s529 = sld [smem:[#allocation4 + $0x12]]
          %v530 = vstv %s529
          %v531 = vmul.f32 %v528, %v530
          %v532 = vadd.f32 %v506, %v531
          %s533 = sld [smem:[#allocation4 + $0x13]]
          %v534 = vstv %s533
          %v535 = vmul.f32 %v528, %v534
          %v536 = vadd.f32 %v516, %v535
          %s537 = sld [smem:[#allocation4 + $0x14]]
          %v538 = vstv %s537
          %v539 = vmul.f32 %v528, %v538
          %v540 = vadd.f32 %v526, %v539
          %s541 = sld [smem:[#allocation4 + $0x15]]
          %v542 = vstv %s541
          %v543 = vmul.f32 %v528, %v542
          %545 = vrot.lane.b32.xlu0 %v543, 112
          %v546 = vpop.permute.xlu0 %545
          %v547 = vrot.slane %v546, 1
          %v548 = vsel %vm392, %v546, %v547
          %v550 = vadd.f32 %v532, %v548
          %s551 = scalar_lea.vmem [#allocation2], 6
          %v552 = vld [vmem:[%s551] ss:$4 sm:$0x3]
          %s553 = sld [smem:[#allocation4 + $0x16]]
          %v554 = vstv %s553
          %v555 = vmul.f32 %v552, %v554
          %557 = vrot.lane.b32.xlu0 %v555, 112
          %v558 = vpop.permute.xlu0 %557
          %v559 = vrot.slane %v558, 7
          %v560 = vsel %vm392, %v559, %v558
          %v562 = vadd.f32 %v536, %v560
          %v563 = vld [vmem:[%s551] ss:$4 sm:$0x7]
          %s564 = sld [smem:[#allocation4 + $0x17]]
          %v565 = vstv %s564
          %v566 = vmul.f32 %v563, %v565
          %568 = vrot.lane.b32.xlu0 %v566, 112
          %v569 = vpop.permute.xlu0 %568
          %v570 = vrot.slane %v569, 7
          %v571 = vsel %vm392, %v570, %v569
          %v573 = vadd.f32 %v540, %v571
          %s574 = sld [smem:[#allocation4 + $0x18]]
          %v575 = vstv %s574
          %v576 = vmul.f32 %v563, %v575
          %578 = vrot.lane.b32.xlu0 %v576, 96
          %v579 = vpop.permute.xlu0 %578
          %v580 = vrot.slane %v579, 7
          %v581 = vsel %vm426, %v580, %v579
          %v583 = vadd.f32 %v550, %v581
          %s584 = sld [smem:[#allocation4 + $0x19]]
          %v585 = vstv %s584
          %v586 = vmul.f32 %v563, %v585
          %588 = vrot.lane.b32.xlu0 %v586, 96
          %v589 = vpop.permute.xlu0 %588
          %v590 = vrot.slane %v589, 7
          %v591 = vsel %vm426, %v590, %v589
          %v593 = vadd.f32 %v562, %v591
          %s594 = sld [smem:[#allocation4 + $0x1a]]
          %v595 = vstv %s594
          %v596 = vmul.f32 %v563, %v595
          %598 = vrot.lane.b32.xlu0 %v596, 96
          %v599 = vpop.permute.xlu0 %598
          %v600 = vrot.slane %v599, 7
          %v601 = vsel %vm426, %v600, %v599
          %v603 = vadd.f32 %v573, %v601
          %v605 = vperm.slane %v583, 0
          %v606 = vperm.slane %v583, 1
          %v607 = vperm.slane %v583, 2
          %608 = vrot.lane.b32.xlu0 %v605, 17
          %v609 = vpop.permute.xlu0 %608
          %610 = vrot.lane.b32.xlu0 %v606, 17
          %v611 = vpop.permute.xlu0 %610
          %612 = vrot.lane.b32.xlu0 %v607, 17
          %v613 = vpop.permute.xlu0 %612
          %vm614 = vcmask 138240
          %v615 = vsel %vm614, %v609, %v611
          %v616 = vsel %vm614, %v611, %v613
          %v619 = vsel %vm371, %v615, 0.0
          %v620 = vsel %vm372, %v616, 0.0
          %v622 = vperm.slane %v593, 0
          %v623 = vperm.slane %v593, 1
          %v624 = vperm.slane %v593, 2
          %625 = vrot.lane.b32.xlu0 %v622, 16
          %v626 = vpop.permute.xlu0 %625
          %627 = vrot.lane.b32.xlu0 %v623, 16
          %v628 = vpop.permute.xlu0 %627
          %629 = vrot.lane.b32.xlu0 %v624, 16
          %v630 = vpop.permute.xlu0 %629
          %vm631 = vcmask 130048
          %v632 = vsel %vm631, %v626, %v628
          %v633 = vsel %vm631, %v628, %v630
          %v636 = vadd.f32 %v619, %v632
          %v637 = vadd.f32 %v620, %v633
          %v639 = vperm.slane %v603, 0
          %v640 = vperm.slane %v603, 1
          %v641 = vperm.slane %v603, 2
          %642 = vrot.lane.b32.xlu0 %v639, 15
          %v643 = vpop.permute.xlu0 %642
          %644 = vrot.lane.b32.xlu0 %v640, 15
          %v645 = vpop.permute.xlu0 %644
          %646 = vrot.lane.b32.xlu0 %v641, 15
          %v647 = vpop.permute.xlu0 %646
          %vm648 = vcmask 121856
          %v649 = vsel %vm648, %v643, %v645
          %v650 = vsel %vm648, %v645, %v647
          %v653 = vsel %vm373, %v649, 0.0
          %v654 = vsel %vm374, %v650, 0.0
          %v655 = vadd.f32 %v636, %v653
          %v656 = vadd.f32 %v637, %v654
          %v659 = vrot.slane %v656, 7
          %vm660 = vcmask 1040384
          %v661 = vsel %vm660, %v655, %v659
          %v663 = vlaneseq
          %vm664 = vcmp.ge.s32.totalorder %v663, 0
          %vm665 = vcmp.lt.s32.totalorder %v663, 256
          %vm666 = vmand %vm664, %vm665
          %667 = vst.msk [vmem:[#allocation3] ss:$4 sm:$0x3] %vm666, %v661
          %v668 = vld [vmem:[#allocation2] ss:$4 sm:$0x7]
          %s669 = sld [smem:[#allocation4 + $0x1b]]
          %v670 = vstv %s669
          %v671 = vmul.f32 %v668, %v670
          %s672 = sld [smem:[#allocation4 + $0x1c]]
          %v673 = vstv %s672
          %v674 = vmul.f32 %v668, %v673
          %s675 = sld [smem:[#allocation4 + $0x1d]]
          %v676 = vstv %s675
          %v677 = vmul.f32 %v668, %v676
          %s678 = sld [smem:[#allocation4 + $0x1e]]
          %v679 = vstv %s678
          %v680 = vmul.f32 %v668, %v679
          %682 = vrot.lane.b32.xlu0 %v680, 112
          %v683 = vpop.permute.xlu0 %682
          %v684 = vrot.slane %v683, 1
          %v685 = vsel %vm392, %v683, %v684
          %v687 = vadd.f32 %v671, %v685
          %v688 = vld [vmem:[%s396] ss:$4 sm:$0x3]
          %s689 = sld [smem:[#allocation4 + $0x1f]]
          %v690 = vstv %s689
          %v691 = vmul.f32 %v688, %v690
          %693 = vrot.lane.b32.xlu0 %v691, 112
          %v694 = vpop.permute.xlu0 %693
          %v695 = vrot.slane %v694, 7
          %v696 = vsel %vm392, %v695, %v694
          %v698 = vadd.f32 %v674, %v696
          %v699 = vld [vmem:[%s396] ss:$4 sm:$0x7]
          %s700 = sld [smem:[#allocation4 + $0x20]]
          %v701 = vstv %s700
          %v702 = vmul.f32 %v699, %v701
          %704 = vrot.lane.b32.xlu0 %v702, 112
          %v705 = vpop.permute.xlu0 %704
          %v706 = vrot.slane %v705, 7
          %v707 = vsel %vm392, %v706, %v705
          %v709 = vadd.f32 %v677, %v707
          %s710 = sld [smem:[#allocation4 + $0x21]]
          %v711 = vstv %s710
          %v712 = vmul.f32 %v699, %v711
          %714 = vrot.lane.b32.xlu0 %v712, 96
          %v715 = vpop.permute.xlu0 %714
          %v716 = vrot.slane %v715, 7
          %v717 = vsel %vm426, %v716, %v715
          %v719 = vadd.f32 %v687, %v717
          %s720 = sld [smem:[#allocation4 + $0x22]]
          %v721 = vstv %s720
          %v722 = vmul.f32 %v699, %v721
          %724 = vrot.lane.b32.xlu0 %v722, 96
          %v725 = vpop.permute.xlu0 %724
          %v726 = vrot.slane %v725, 7
          %v727 = vsel %vm426, %v726, %v725
          %v729 = vadd.f32 %v698, %v727
          %s730 = sld [smem:[#allocation4 + $0x23]]
          %v731 = vstv %s730
          %v732 = vmul.f32 %v699, %v731
          %734 = vrot.lane.b32.xlu0 %v732, 96
          %v735 = vpop.permute.xlu0 %734
          %v736 = vrot.slane %v735, 7
          %v737 = vsel %vm426, %v736, %v735
          %v739 = vadd.f32 %v709, %v737
          %v740 = vld [vmem:[%s450] ss:$4 sm:$0x7]
          %s741 = sld [smem:[#allocation4 + $0x24]]
          %v742 = vstv %s741
          %v743 = vmul.f32 %v740, %v742
          %v744 = vadd.f32 %v719, %v743
          %s745 = sld [smem:[#allocation4 + $0x25]]
          %v746 = vstv %s745
          %v747 = vmul.f32 %v740, %v746
          %v748 = vadd.f32 %v729, %v747
          %s749 = sld [smem:[#allocation4 + $0x26]]
          %v750 = vstv %s749
          %v751 = vmul.f32 %v740, %v750
          %v752 = vadd.f32 %v739, %v751
          %s753 = sld [smem:[#allocation4 + $0x27]]
          %v754 = vstv %s753
          %v755 = vmul.f32 %v740, %v754
          %757 = vrot.lane.b32.xlu0 %v755, 112
          %v758 = vpop.permute.xlu0 %757
          %v759 = vrot.slane %v758, 1
          %v760 = vsel %vm392, %v758, %v759
          %v762 = vadd.f32 %v744, %v760
          %v763 = vld [vmem:[%s474] ss:$4 sm:$0x3]
          %s764 = sld [smem:[#allocation4 + $0x28]]
          %v765 = vstv %s764
          %v766 = vmul.f32 %v763, %v765
          %768 = vrot.lane.b32.xlu0 %v766, 112
          %v769 = vpop.permute.xlu0 %768
          %v770 = vrot.slane %v769, 7
          %v771 = vsel %vm392, %v770, %v769
          %v773 = vadd.f32 %v748, %v771
          %v774 = vld [vmem:[%s474] ss:$4 sm:$0x7]
          %s775 = sld [smem:[#allocation4 + $0x29]]
          %v776 = vstv %s775
          %v777 = vmul.f32 %v774, %v776
          %779 = vrot.lane.b32.xlu0 %v777, 112
          %v780 = vpop.permute.xlu0 %779
          %v781 = vrot.slane %v780, 7
          %v782 = vsel %vm392, %v781, %v780
          %v784 = vadd.f32 %v752, %v782
          %s785 = sld [smem:[#allocation4 + $0x2a]]
          %v786 = vstv %s785
          %v787 = vmul.f32 %v774, %v786
          %789 = vrot.lane.b32.xlu0 %v787, 96
          %v790 = vpop.permute.xlu0 %789
          %v791 = vrot.slane %v790, 7
          %v792 = vsel %vm426, %v791, %v790
          %v794 = vadd.f32 %v762, %v792
          %s795 = sld [smem:[#allocation4 + $0x2b]]
          %v796 = vstv %s795
          %v797 = vmul.f32 %v774, %v796
          %799 = vrot.lane.b32.xlu0 %v797, 96
          %v800 = vpop.permute.xlu0 %799
          %v801 = vrot.slane %v800, 7
          %v802 = vsel %vm426, %v801, %v800
          %v804 = vadd.f32 %v773, %v802
          %s805 = sld [smem:[#allocation4 + $0x2c]]
          %v806 = vstv %s805
          %v807 = vmul.f32 %v774, %v806
          %809 = vrot.lane.b32.xlu0 %v807, 96
          %v810 = vpop.permute.xlu0 %809
          %v811 = vrot.slane %v810, 7
          %v812 = vsel %vm426, %v811, %v810
          %v814 = vadd.f32 %v784, %v812
          %v815 = vld [vmem:[%s527] ss:$4 sm:$0x7]
          %s816 = sld [smem:[#allocation4 + $0x2d]]
          %v817 = vstv %s816
          %v818 = vmul.f32 %v815, %v817
          %v819 = vadd.f32 %v794, %v818
          %s820 = sld [smem:[#allocation4 + $0x2e]]
          %v821 = vstv %s820
          %v822 = vmul.f32 %v815, %v821
          %v823 = vadd.f32 %v804, %v822
          %s824 = sld [smem:[#allocation4 + $0x2f]]
          %v825 = vstv %s824
          %v826 = vmul.f32 %v815, %v825
          %v827 = vadd.f32 %v814, %v826
          %s828 = sld [smem:[#allocation4 + $0x30]]
          %v829 = vstv %s828
          %v830 = vmul.f32 %v815, %v829
          %832 = vrot.lane.b32.xlu0 %v830, 112
          %v833 = vpop.permute.xlu0 %832
          %v834 = vrot.slane %v833, 1
          %v835 = vsel %vm392, %v833, %v834
          %v837 = vadd.f32 %v819, %v835
          %v838 = vld [vmem:[%s551] ss:$4 sm:$0x3]
          %s839 = sld [smem:[#allocation4 + $0x31]]
          %v840 = vstv %s839
          %v841 = vmul.f32 %v838, %v840
          %843 = vrot.lane.b32.xlu0 %v841, 112
          %v844 = vpop.permute.xlu0 %843
          %v845 = vrot.slane %v844, 7
          %v846 = vsel %vm392, %v845, %v844
          %v848 = vadd.f32 %v823, %v846
          %v849 = vld [vmem:[%s551] ss:$4 sm:$0x7]
          %s850 = sld [smem:[#allocation4 + $0x32]]
          %v851 = vstv %s850
          %v852 = vmul.f32 %v849, %v851
          %854 = vrot.lane.b32.xlu0 %v852, 112
          %v855 = vpop.permute.xlu0 %854
          %v856 = vrot.slane %v855, 7
          %v857 = vsel %vm392, %v856, %v855
          %v859 = vadd.f32 %v827, %v857
          %s860 = sld [smem:[#allocation4 + $0x33]]
          %v861 = vstv %s860
          %v862 = vmul.f32 %v849, %v861
          %864 = vrot.lane.b32.xlu0 %v862, 96
          %v865 = vpop.permute.xlu0 %864
          %v866 = vrot.slane %v865, 7
          %v867 = vsel %vm426, %v866, %v865
          %v869 = vadd.f32 %v837, %v867
          %s870 = sld [smem:[#allocation4 + $0x34]]
          %v871 = vstv %s870
          %v872 = vmul.f32 %v849, %v871
          %874 = vrot.lane.b32.xlu0 %v872, 96
          %v875 = vpop.permute.xlu0 %874
          %v876 = vrot.slane %v875, 7
          %v877 = vsel %vm426, %v876, %v875
          %v879 = vadd.f32 %v848, %v877
          %s880 = sld [smem:[#allocation4 + $0x35]]
          %v881 = vstv %s880
          %v882 = vmul.f32 %v849, %v881
          %884 = vrot.lane.b32.xlu0 %v882, 96
          %v885 = vpop.permute.xlu0 %884
          %v886 = vrot.slane %v885, 7
          %v887 = vsel %vm426, %v886, %v885
          %v889 = vadd.f32 %v859, %v887
          %v891 = vperm.slane %v869, 0
          %v892 = vperm.slane %v869, 1
          %v893 = vperm.slane %v869, 2
          %894 = vrot.lane.b32.xlu0 %v891, 17
          %v895 = vpop.permute.xlu0 %894
          %896 = vrot.lane.b32.xlu0 %v892, 17
          %v897 = vpop.permute.xlu0 %896
          %898 = vrot.lane.b32.xlu0 %v893, 17
          %v899 = vpop.permute.xlu0 %898
          %v900 = vsel %vm614, %v895, %v897
          %v901 = vsel %vm614, %v897, %v899
          %v904 = vsel %vm371, %v900, 0.0
          %v905 = vsel %vm372, %v901, 0.0
          %v907 = vperm.slane %v879, 0
          %v908 = vperm.slane %v879, 1
          %v909 = vperm.slane %v879, 2
          %910 = vrot.lane.b32.xlu0 %v907, 16
          %v911 = vpop.permute.xlu0 %910
          %912 = vrot.lane.b32.xlu0 %v908, 16
          %v913 = vpop.permute.xlu0 %912
          %914 = vrot.lane.b32.xlu0 %v909, 16
          %v915 = vpop.permute.xlu0 %914
          %v916 = vsel %vm631, %v911, %v913
          %v917 = vsel %vm631, %v913, %v915
          %v920 = vadd.f32 %v904, %v916
          %v921 = vadd.f32 %v905, %v917
          %v923 = vperm.slane %v889, 0
          %v924 = vperm.slane %v889, 1
          %v925 = vperm.slane %v889, 2
          %926 = vrot.lane.b32.xlu0 %v923, 15
          %v927 = vpop.permute.xlu0 %926
          %928 = vrot.lane.b32.xlu0 %v924, 15
          %v929 = vpop.permute.xlu0 %928
          %930 = vrot.lane.b32.xlu0 %v925, 15
          %v931 = vpop.permute.xlu0 %930
          %v932 = vsel %vm648, %v927, %v929
          %v933 = vsel %vm648, %v929, %v931
          %v936 = vsel %vm373, %v932, 0.0
          %v937 = vsel %vm374, %v933, 0.0
          %v938 = vadd.f32 %v920, %v936
          %v939 = vadd.f32 %v921, %v937
          %v942 = vrot.slane %v939, 7
          %v943 = vsel %vm660, %v938, %v942
          %s945 = scalar_lea.vmem [#allocation3], 1
          %946 = vst.msk [vmem:[%s945] ss:$4 sm:$0x3] %vm666, %v943
          %v947 = vld [vmem:[#allocation2] ss:$4 sm:$0x7]
          %s948 = sld [smem:[#allocation4 + $0x36]]
          %v949 = vstv %s948
          %v950 = vmul.f32 %v947, %v949
          %s951 = sld [smem:[#allocation4 + $0x37]]
          %v952 = vstv %s951
          %v953 = vmul.f32 %v947, %v952
          %s954 = sld [smem:[#allocation4 + $0x38]]
          %v955 = vstv %s954
          %v956 = vmul.f32 %v947, %v955
          %s957 = sld [smem:[#allocation4 + $0x39]]
          %v958 = vstv %s957
          %v959 = vmul.f32 %v947, %v958
          %961 = vrot.lane.b32.xlu0 %v959, 112
          %v962 = vpop.permute.xlu0 %961
          %v963 = vrot.slane %v962, 1
          %v964 = vsel %vm392, %v962, %v963
          %v966 = vadd.f32 %v950, %v964
          %v967 = vld [vmem:[%s396] ss:$4 sm:$0x3]
          %s968 = sld [smem:[#allocation4 + $0x3a]]
          %v969 = vstv %s968
          %v970 = vmul.f32 %v967, %v969
          %972 = vrot.lane.b32.xlu0 %v970, 112
          %v973 = vpop.permute.xlu0 %972
          %v974 = vrot.slane %v973, 7
          %v975 = vsel %vm392, %v974, %v973
          %v977 = vadd.f32 %v953, %v975
          %v978 = vld [vmem:[%s396] ss:$4 sm:$0x7]
          %s979 = sld [smem:[#allocation4 + $0x3b]]
          %v980 = vstv %s979
          %v981 = vmul.f32 %v978, %v980
          %983 = vrot.lane.b32.xlu0 %v981, 112
          %v984 = vpop.permute.xlu0 %983
          %v985 = vrot.slane %v984, 7
          %v986 = vsel %vm392, %v985, %v984
          %v988 = vadd.f32 %v956, %v986
          %s989 = sld [smem:[#allocation4 + $0x3c]]
          %v990 = vstv %s989
          %v991 = vmul.f32 %v978, %v990
          %993 = vrot.lane.b32.xlu0 %v991, 96
          %v994 = vpop.permute.xlu0 %993
          %v995 = vrot.slane %v994, 7
          %v996 = vsel %vm426, %v995, %v994
          %v998 = vadd.f32 %v966, %v996
          %s999 = sld [smem:[#allocation4 + $0x3d]]
          %v1000 = vstv %s999
          %v1001 = vmul.f32 %v978, %v1000
          %1003 = vrot.lane.b32.xlu0 %v1001, 96
          %v1004 = vpop.permute.xlu0 %1003
          %v1005 = vrot.slane %v1004, 7
          %v1006 = vsel %vm426, %v1005, %v1004
          %v1008 = vadd.f32 %v977, %v1006
          %s1009 = sld [smem:[#allocation4 + $0x3e]]
          %v1010 = vstv %s1009
          %v1011 = vmul.f32 %v978, %v1010
          %1013 = vrot.lane.b32.xlu0 %v1011, 96
          %v1014 = vpop.permute.xlu0 %1013
          %v1015 = vrot.slane %v1014, 7
          %v1016 = vsel %vm426, %v1015, %v1014
          %v1018 = vadd.f32 %v988, %v1016
          %v1019 = vld [vmem:[%s450] ss:$4 sm:$0x7]
          %s1020 = sld [smem:[#allocation4 + $0x3f]]
          %v1021 = vstv %s1020
          %v1022 = vmul.f32 %v1019, %v1021
          %v1023 = vadd.f32 %v998, %v1022
          %s1024 = sld [smem:[#allocation4 + $0x40]]
          %v1025 = vstv %s1024
          %v1026 = vmul.f32 %v1019, %v1025
          %v1027 = vadd.f32 %v1008, %v1026
          %s1028 = sld [smem:[#allocation4 + $0x41]]
          %v1029 = vstv %s1028
          %v1030 = vmul.f32 %v1019, %v1029
          %v1031 = vadd.f32 %v1018, %v1030
          %s1032 = sld [smem:[#allocation4 + $0x42]]
          %v1033 = vstv %s1032
          %v1034 = vmul.f32 %v1019, %v1033
          %1036 = vrot.lane.b32.xlu0 %v1034, 112
          %v1037 = vpop.permute.xlu0 %1036
          %v1038 = vrot.slane %v1037, 1
          %v1039 = vsel %vm392, %v1037, %v1038
          %v1041 = vadd.f32 %v1023, %v1039
          %v1042 = vld [vmem:[%s474] ss:$4 sm:$0x3]
          %s1043 = sld [smem:[#allocation4 + $0x43]]
          %v1044 = vstv %s1043
          %v1045 = vmul.f32 %v1042, %v1044
          %1047 = vrot.lane.b32.xlu0 %v1045, 112
          %v1048 = vpop.permute.xlu0 %1047
          %v1049 = vrot.slane %v1048, 7
          %v1050 = vsel %vm392, %v1049, %v1048
          %v1052 = vadd.f32 %v1027, %v1050
          %v1053 = vld [vmem:[%s474] ss:$4 sm:$0x7]
          %s1054 = sld [smem:[#allocation4 + $0x44]]
          %v1055 = vstv %s1054
          %v1056 = vmul.f32 %v1053, %v1055
          %1058 = vrot.lane.b32.xlu0 %v1056, 112
          %v1059 = vpop.permute.xlu0 %1058
          %v1060 = vrot.slane %v1059, 7
          %v1061 = vsel %vm392, %v1060, %v1059
          %v1063 = vadd.f32 %v1031, %v1061
          %s1064 = sld [smem:[#allocation4 + $0x45]]
          %v1065 = vstv %s1064
          %v1066 = vmul.f32 %v1053, %v1065
          %1068 = vrot.lane.b32.xlu0 %v1066, 96
          %v1069 = vpop.permute.xlu0 %1068
          %v1070 = vrot.slane %v1069, 7
          %v1071 = vsel %vm426, %v1070, %v1069
          %v1073 = vadd.f32 %v1041, %v1071
          %s1074 = sld [smem:[#allocation4 + $0x46]]
          %v1075 = vstv %s1074
          %v1076 = vmul.f32 %v1053, %v1075
          %1078 = vrot.lane.b32.xlu0 %v1076, 96
          %v1079 = vpop.permute.xlu0 %1078
          %v1080 = vrot.slane %v1079, 7
          %v1081 = vsel %vm426, %v1080, %v1079
          %v1083 = vadd.f32 %v1052, %v1081
          %s1084 = sld [smem:[#allocation4 + $0x47]]
          %v1085 = vstv %s1084
          %v1086 = vmul.f32 %v1053, %v1085
          %1088 = vrot.lane.b32.xlu0 %v1086, 96
          %v1089 = vpop.permute.xlu0 %1088
          %v1090 = vrot.slane %v1089, 7
          %v1091 = vsel %vm426, %v1090, %v1089
          %v1093 = vadd.f32 %v1063, %v1091
          %v1094 = vld [vmem:[%s527] ss:$4 sm:$0x7]
          %s1095 = sld [smem:[#allocation4 + $0x48]]
          %v1096 = vstv %s1095
          %v1097 = vmul.f32 %v1094, %v1096
          %v1098 = vadd.f32 %v1073, %v1097
          %s1099 = sld [smem:[#allocation4 + $0x49]]
          %v1100 = vstv %s1099
          %v1101 = vmul.f32 %v1094, %v1100
          %v1102 = vadd.f32 %v1083, %v1101
          %s1103 = sld [smem:[#allocation4 + $0x4a]]
          %v1104 = vstv %s1103
          %v1105 = vmul.f32 %v1094, %v1104
          %v1106 = vadd.f32 %v1093, %v1105
          %s1107 = sld [smem:[#allocation4 + $0x4b]]
          %v1108 = vstv %s1107
          %v1109 = vmul.f32 %v1094, %v1108
          %1111 = vrot.lane.b32.xlu0 %v1109, 112
          %v1112 = vpop.permute.xlu0 %1111
          %v1113 = vrot.slane %v1112, 1
          %v1114 = vsel %vm392, %v1112, %v1113
          %v1116 = vadd.f32 %v1098, %v1114
          %v1117 = vld [vmem:[%s551] ss:$4 sm:$0x3]
          %s1118 = sld [smem:[#allocation4 + $0x4c]]
          %v1119 = vstv %s1118
          %v1120 = vmul.f32 %v1117, %v1119
          %1122 = vrot.lane.b32.xlu0 %v1120, 112
          %v1123 = vpop.permute.xlu0 %1122
          %v1124 = vrot.slane %v1123, 7
          %v1125 = vsel %vm392, %v1124, %v1123
          %v1127 = vadd.f32 %v1102, %v1125
          %v1128 = vld [vmem:[%s551] ss:$4 sm:$0x7]
          %s1129 = sld [smem:[#allocation4 + $0x4d]]
          %v1130 = vstv %s1129
          %v1131 = vmul.f32 %v1128, %v1130
          %1133 = vrot.lane.b32.xlu0 %v1131, 112
          %v1134 = vpop.permute.xlu0 %1133
          %v1135 = vrot.slane %v1134, 7
          %v1136 = vsel %vm392, %v1135, %v1134
          %v1138 = vadd.f32 %v1106, %v1136
          %s1139 = sld [smem:[#allocation4 + $0x4e]]
          %v1140 = vstv %s1139
          %v1141 = vmul.f32 %v1128, %v1140
          %1143 = vrot.lane.b32.xlu0 %v1141, 96
          %v1144 = vpop.permute.xlu0 %1143
          %v1145 = vrot.slane %v1144, 7
          %v1146 = vsel %vm426, %v1145, %v1144
          %v1148 = vadd.f32 %v1116, %v1146
          %s1149 = sld [smem:[#allocation4 + $0x4f]]
          %v1150 = vstv %s1149
          %v1151 = vmul.f32 %v1128, %v1150
          %1153 = vrot.lane.b32.xlu0 %v1151, 96
          %v1154 = vpop.permute.xlu0 %1153
          %v1155 = vrot.slane %v1154, 7
          %v1156 = vsel %vm426, %v1155, %v1154
          %v1158 = vadd.f32 %v1127, %v1156
          %s1159 = sld [smem:[#allocation4 + $0x50]]
          %v1160 = vstv %s1159
          %v1161 = vmul.f32 %v1128, %v1160
          %1163 = vrot.lane.b32.xlu0 %v1161, 96
          %v1164 = vpop.permute.xlu0 %1163
          %v1165 = vrot.slane %v1164, 7
          %v1166 = vsel %vm426, %v1165, %v1164
          %v1168 = vadd.f32 %v1138, %v1166
          %v1170 = vperm.slane %v1148, 0
          %v1171 = vperm.slane %v1148, 1
          %v1172 = vperm.slane %v1148, 2
          %1173 = vrot.lane.b32.xlu0 %v1170, 17
          %v1174 = vpop.permute.xlu0 %1173
          %1175 = vrot.lane.b32.xlu0 %v1171, 17
          %v1176 = vpop.permute.xlu0 %1175
          %1177 = vrot.lane.b32.xlu0 %v1172, 17
          %v1178 = vpop.permute.xlu0 %1177
          %v1179 = vsel %vm614, %v1174, %v1176
          %v1180 = vsel %vm614, %v1176, %v1178
          %v1183 = vsel %vm371, %v1179, 0.0
          %v1184 = vsel %vm372, %v1180, 0.0
          %v1186 = vperm.slane %v1158, 0
          %v1187 = vperm.slane %v1158, 1
          %v1188 = vperm.slane %v1158, 2
          %1189 = vrot.lane.b32.xlu0 %v1186, 16
          %v1190 = vpop.permute.xlu0 %1189
          %1191 = vrot.lane.b32.xlu0 %v1187, 16
          %v1192 = vpop.permute.xlu0 %1191
          %1193 = vrot.lane.b32.xlu0 %v1188, 16
          %v1194 = vpop.permute.xlu0 %1193
          %v1195 = vsel %vm631, %v1190, %v1192
          %v1196 = vsel %vm631, %v1192, %v1194
          %v1199 = vadd.f32 %v1183, %v1195
          %v1200 = vadd.f32 %v1184, %v1196
          %v1202 = vperm.slane %v1168, 0
          %v1203 = vperm.slane %v1168, 1
          %v1204 = vperm.slane %v1168, 2
          %1205 = vrot.lane.b32.xlu0 %v1202, 15
          %v1206 = vpop.permute.xlu0 %1205
          %1207 = vrot.lane.b32.xlu0 %v1203, 15
          %v1208 = vpop.permute.xlu0 %1207
          %1209 = vrot.lane.b32.xlu0 %v1204, 15
          %v1210 = vpop.permute.xlu0 %1209
          %v1211 = vsel %vm648, %v1206, %v1208
          %v1212 = vsel %vm648, %v1208, %v1210
          %v1215 = vsel %vm373, %v1211, 0.0
          %v1216 = vsel %vm374, %v1212, 0.0
          %v1217 = vadd.f32 %v1199, %v1215
          %v1218 = vadd.f32 %v1200, %v1216
          %v1221 = vrot.slane %v1218, 7
          %v1222 = vsel %vm660, %v1217, %v1221
          %s1224 = scalar_lea.vmem [#allocation3], 2
          %1225 = vst.msk [vmem:[%s1224] ss:$4 sm:$0x3] %vm666, %v1222
        $region52: #{full_generator_forward.1} parent=43 // pred_fallthru
          _
        %v1226 = vld [vmem:[%s326] sm:$0xff]
        %v1227 = vld [vmem:[%s318] sm:$0xff]
        %v1228 = vsub.f32 %v1226, %v1227
        %vm1229 = vcmask 23552
        %v1230 = vsel %vm1229, %v1228, 0.0
        %v1231 = vrot.slane %v1230, 4
        %v1232 = vadd.f32 %v1230, %v1231
        %v1233 = vrot.slane %v1232, 2
        %v1234 = vadd.f32 %v1232, %v1233
        %v1235 = vrot.slane %v1234, 1
        %v1236 = vadd.f32 %v1234, %v1235
        %v1237 = vrcp.pop 8.0
        %v1238 = vmul.f32 8.0, %v1237
        %v1239 = vsub.f32 1.0, %v1238
        %v1240 = vmul.f32 %v1237, %v1239
        %v1241 = vadd.f32 %v1237, %v1240
        %vm1242 = vweird.f32 %v1237
        %v1243 = vsel %vm1242, %v1237, %v1241
        %v1244 = vmul.f32 %v1236, %v1243
        %v1245 = vld [vmem:[%s3] sm:$0x7]
        %v1246 = vmul.f32 %v1245, %v1244
        %vm1247 = vcmask 18432
        %v1248 = vsel %vm1247, %v1246, 0.0
        %1249 = vadd.xlane.f32.xlu0 %v1248
        %v1250 = vpop.xlane.xlu0 %1249
        %v1251 = vld [vmem:[%s4] sm:$0x7]
        %v1252 = vadd.f32 %v1250, %v1251
        %v1253 = vld [vmem:[#allocation3] sm:$0x77]
        %1255 = vset.pattern.permute.xlu0 0
        %1256 = vperm.xlu0 %1255, %v1252
        %v1257 = vpop.permute.xlu0 %1256
        %v1259 = vunpack.c.l.s4 839922192
        %v1260 = vunpack.c.0.s8 %v1259
        %v1261 = vperm.slane %v1257, %v1260
        %v1263 = vadd.f32 %v1253, %v1261
        %v1264 = vxor.u32 %v1263, 2147483648
        %v1265 = vmul.f32 %v1264, 1.442695
        %v1266 = vpow.pop %v1265
        %v1267 = vadd.f32 %v1266, 1.0
        %v1268 = vrcp.pop %v1267
        %v1269 = vmul.f32 %v1267, %v1268
        %v1270 = vsub.f32 1.0, %v1269
        %v1271 = vmul.f32 %v1268, %v1270
        %v1272 = vadd.f32 %v1268, %v1271
        %vm1273 = vweird.f32 %v1267
        %vm1274 = vweird.f32 %v1268
        %vm1275 = vmor %vm1273, %vm1274
        %v1276 = vsel %vm1275, %v1268, %v1272
        %v1277 = vand.u32 2147483647, %v1267
        %vm1278 = vcmp.eq.f32.partialorder %v1277, 8.507059e+37
        %v1279 = vand.u32 %v1267, 2147483648
        %v1280 = vor.u32 1.1754944e-38, %v1279
        %v1281 = vsel %vm1278, %v1280, %v1276
        %v1282 = vmul.f32 1.0, %v1281
        %1283 = vst [vmem:[%s335] sm:$0x77] %v1282
        %p1284 = scmp.lt.s32.totalorder %s22, 1
        %s1285 = scalar_select %p1284, %s22, 1
        %p1286 = scmp.lt.s32.totalorder %s23, 1
        %s1287 = scalar_select %p1286, %s23, 1
        %s1288 = smul.addr %s1287, 2
        %s1289 = smul.addr %s1285, 4
        %s1290 = sadd.s32 %s1288, %s1289
        %s1291 = smul.addr %s1290, 4
        %s1292 = scalar_lea.vmem %s6, %s1291
        // Predicated region
        $region53: #{full_generator_forward.1} parent=43 // pred_check
          %p1293 = pneg %p193
        $region54: #{full_generator_forward.1} parent=43 // pred_check_branch
          %1295 = sbr.rel (%p1293) target = $region56
        $region55: #{full_generator_forward.1} parent=43 // pred_region
          _
        $region56: #{full_generator_forward.1} parent=43 // pred_fallthru
          _
      $region44: #{full_generator_forward.1} parent=5 // pred_fallthru
        _
      %p1296 = scmp.le.s32.totalorder 2, %s13
      // Predicated region
      $region57: #{full_generator_forward.1} parent=5 // pred_check
        %p1297 = pneg %p1296
      $region58: #{full_generator_forward.1} parent=5 // pred_check_branch
        %1299 = sbr.rel (%p1297) target = $region60
      $region59: #{full_generator_forward.1} parent=5 // pred_region
        %s1300 = ssub.s32 %s13, 2
        // Predicated region
        $region61: #{full_generator_forward.1} parent=59 // pred_check
          %p1301 = pneg %p199
        $region62: #{full_generator_forward.1} parent=59 // pred_check_branch
          %1303 = sbr.rel (%p1301) target = $region64
        $region63: #{full_generator_forward.1} parent=59 // pred_region
          %p1304 = scmp.lt.s32.totalorder %s24, 1
          %s1305 = scalar_select %p1304, %s24, 1
          %p1306 = scmp.lt.s32.totalorder %s25, 1
          %s1307 = scalar_select %p1306, %s25, 1
          %s1308 = smul.addr %s1307, 2
          %s1309 = smul.addr %s1305, 4
          %s1310 = sadd.s32 %s1308, %s1309
          %s1311 = smul.addr %s1310, 4
          %s1312 = scalar_lea.vmem %s6, %s1311
        $region64: #{full_generator_forward.1} parent=59 // pred_fallthru
          _
      $region60: #{full_generator_forward.1} parent=5 // pred_fallthru
        _
    $region6: #{full_generator_forward.1} parent=1 // loop_footer
      %s17 = sadd.s32 1, %s13
    $region7: #{full_generator_forward.1} parent=1 // loop_footer_branch
      %12 = sbr.rel target = $region3
    $region8: #{full_generator_forward.1} parent=1 // loop_exit
      _
    %1313 = vsyncpa [#allocation5], 1
    %s1314 = scalar_lea.sflag [#allocation5], 1
    %1315 = vsyncpa %s1314, 1

</llo_original>
